<compile_context>
chip_gen: v7x
topology: tpu7x:2x2x1
jax: 0.10.0
libtpu: 0.0.40
codegen_flags: <defaults>
</compile_context>

<pallas_src>
import jax
import jax.numpy as jnp
from jax import lax
from jax.experimental import pallas as pl
from jax.experimental.pallas import tpu as pltpu

_SA_K = 7          # SpatialAttention kernel size
_SA_PAD = (_SA_K - 1) // 2


def _fusion_cbam_kernel(fl_ref, fg_ref, w1a_ref, w1b_ref, bnb_ref,
                        wfc1_ref, wfc2_ref, msa_ref, out_ref):
    # Per-grid-step block shapes (one batch image per step):
    #   fl_ref / fg_ref : (1, C, HW) bf16 VMEM   (HW = H*W in lanes -> dense vregs)
    #   out_ref         : (1, C, HW) f32  VMEM
    #   w1a_ref/w1b_ref : (C, C)     bf16 VMEM   (1x1 conv weight halves, BN scale folded in)
    #   bnb_ref         : (C, 1)     f32  VMEM   (folded BatchNorm shift)
    #   wfc1_ref (Cr,C), wfc2_ref (C,Cr)  f32    (ChannelAttention MLP)
    #   msa_ref         : (2*HW, HW) f32  VMEM   (banded 7x7 SA conv matrix, zero-pad baked in)
    C = out_ref.shape[1]

    fl = fl_ref[0]                                   # (C, HW) bf16
    fg = fg_ref[0]                                   # (C, HW) bf16

    # ---- 1x1 conv over the (virtually) concatenated features: two matmuls, f32 accumulate ----
    y = jnp.dot(w1a_ref[...], fl, preferred_element_type=jnp.float32)
    y = y + jnp.dot(w1b_ref[...], fg, preferred_element_type=jnp.float32)   # (C, HW) f32

    # ---- BatchNorm (inference mode; scale folded into w1, shift here) + ReLU ----
    # TODO(synk): training-mode batch statistics not implemented; eval-mode BN only.
    y = jnp.maximum(y + bnb_ref[...], 0.0)           # (C, HW)

    # ---- CBAM: channel attention (avg/max pooled columns stacked -> 2 tiny matmuls) ----
    avg_p = jnp.mean(y, axis=1, keepdims=True)       # (C, 1)  == AdaptiveAvgPool2d(1)
    max_p = jnp.max(y, axis=1, keepdims=True)        # (C, 1)  == AdaptiveMaxPool2d(1)
    two = jax.lax.broadcasted_iota(jnp.int32, (C, 2), 1)
    pooled = jnp.where(two == 0, avg_p, max_p)       # (C, 2): col0 = avg, col1 = max
    h = jnp.maximum(jnp.dot(wfc1_ref[...], pooled,
                            preferred_element_type=jnp.float32), 0.0)   # (Cr, 2)
    o = jnp.dot(wfc2_ref[...], h, preferred_element_type=jnp.float32)   # (C, 2)
    ca = jax.nn.sigmoid(jnp.sum(o, axis=1, keepdims=True))              # (C, 1)
    y = y * ca                                        # broadcast (C,1) over HW lanes

    # ---- CBAM: spatial attention (7x7 zero-padded conv as one banded matmul on the MXU) ----
    avg_m = jnp.mean(y, axis=0, keepdims=True)        # (1, HW)  mean over channels
    max_m = jnp.max(y, axis=0, keepdims=True)         # (1, HW)  max over channels
    maps = jnp.concatenate([avg_m, max_m], axis=1)    # (1, 2*HW) lane concat (128-aligned)
    sa = jax.nn.sigmoid(jnp.dot(maps, msa_ref[...],
                                preferred_element_type=jnp.float32))    # (1, HW)

    out_ref[0] = (y * sa).astype(out_ref.dtype)       # lane-dense (C, HW) store


def _build_sa_band_matrix(wsa, H, W):
    """Banded matrix M (2*HW, HW) s.t. conv7x7([avg;max]).flat == [avg.flat, max.flat] @ M."""
    HW = H * W
    pos = jnp.arange(HW)
    hr = pos // W
    wr = pos % W
    dh = hr[:, None] - hr[None, :]                    # (HW, HW): input row - output row
    dw = wr[:, None] - wr[None, :]                    # (HW, HW): input col - output col
    valid = (jnp.abs(dh) <= _SA_PAD) & (jnp.abs(dw) <= _SA_PAD)
    ki = jnp.clip(dh + _SA_PAD, 0, _SA_K - 1)
    kj = jnp.clip(dw + _SA_PAD, 0, _SA_K - 1)
    k_avg = wsa[0, 0]                                 # (7, 7) taps for channel-avg map
    k_max = wsa[0, 1]                                 # (7, 7) taps for channel-max map
    m_avg = jnp.where(valid, k_avg[ki, kj], 0.0)      # (HW, HW)
    m_max = jnp.where(valid, k_max[ki, kj], 0.0)      # (HW, HW)
    return jnp.concatenate([m_avg, m_max], axis=0).astype(jnp.float32)   # (2*HW, HW)


def fusion_module_forward(feat_local, feat_global, params):
    """feat_local, feat_global: (N, C, H, W) float32 (PyTorch NCHW). Returns (N, C, H, W)."""
    N, C, H, W = feat_local.shape
    HW = H * W
    Cr = params["wfc1"].shape[0]
    eps = 1e-5

    # NCHW -> (N, C, H*W): pure reshape (contiguous); cast to bf16 to halve activation DMAs
    # (MXU default precision is bf16-operand anyway; accumulation stays f32).
    fl = feat_local.reshape(N, C, HW).astype(jnp.bfloat16)
    fg = feat_global.reshape(N, C, HW).astype(jnp.bfloat16)

    # fold eval-mode BatchNorm: scale into the conv weight, shift passed separately
    scale = params["gamma"] / jnp.sqrt(params["var"] + eps)               # (C,)
    shift = params["beta"] - params["mean"] * scale                       # (C,)
    w1s = (params["w1"].astype(jnp.float32) * scale[:, None])             # (C, 2C) scaled
    w1a = w1s[:, :C].astype(jnp.bfloat16)                                 # (C, C) for feat_local
    w1b = w1s[:, C:].astype(jnp.bfloat16)                                 # (C, C) for feat_global
    bnb = shift.reshape(C, 1).astype(jnp.float32)

    wfc1 = params["wfc1"].astype(jnp.float32)                             # (Cr, C)
    wfc2 = params["wfc2"].astype(jnp.float32)                             # (C, Cr)

    # 7x7 spatial-attention conv as a banded matrix (zero padding + taps baked in)
    msa = _build_sa_band_matrix(params["wsa"].astype(jnp.float32), H, W)  # (2*HW, HW)

    out = pl.pallas_call(
        _fusion_cbam_kernel,
        out_shape=jax.ShapeDtypeStruct((N, C, HW), jnp.float32),
        grid=(N,),
        in_specs=[
            pl.BlockSpec((1, C, HW), lambda b: (b, 0, 0)),
            pl.BlockSpec((1, C, HW), lambda b: (b, 0, 0)),
            pl.BlockSpec((C, C), lambda b: (0, 0)),
            pl.BlockSpec((C, C), lambda b: (0, 0)),
            pl.BlockSpec((C, 1), lambda b: (0, 0)),
            pl.BlockSpec((Cr, C), lambda b: (0, 0)),
            pl.BlockSpec((C, Cr), lambda b: (0, 0)),
            pl.BlockSpec((2 * HW, HW), lambda b: (0, 0)),
        ],
        out_specs=pl.BlockSpec((1, C, HW), lambda b: (b, 0, 0)),
        compiler_params=pltpu.CompilerParams(dimension_semantics=("parallel",)),
    )(fl, fg, w1a, w1b, bnb, wfc1, wfc2, msa)

    return out.reshape(N, C, H, W)


def reference_forward(fl, fg, p):
    """Plain-JAX reference mirroring the PyTorch module (NCHW, eval-mode BN), f32 HIGHEST."""
    hp = jax.lax.Precision.HIGHEST
    eps = 1e-5
    x = jnp.concatenate([fl, fg], axis=1)                               # (N, 2C, H, W)
    y = jnp.einsum("oi,nihw->nohw", p["w1"], x, precision=hp)
    scale = p["gamma"] / jnp.sqrt(p["var"] + eps)
    shift = p["beta"] - p["mean"] * scale
    y = y * scale[None, :, None, None] + shift[None, :, None, None]
    y = jnp.maximum(y, 0.0)
    avg_p = y.mean(axis=(2, 3))
    max_p = y.max(axis=(2, 3))

    def fc(v):
        h = jnp.maximum(jnp.dot(v, p["wfc1"].T, precision=hp), 0.0)
        return jnp.dot(h, p["wfc2"].T, precision=hp)

    ca = jax.nn.sigmoid(fc(avg_p) + fc(max_p))                          # (N, C)
    y = y * ca[:, :, None, None]
    avg_c = y.mean(axis=1, keepdims=True)
    max_c = y.max(axis=1, keepdims=True)
    xc = jnp.concatenate([avg_c, max_c], axis=1)                        # (N, 2, H, W)
    sa = lax.conv_general_dilated(xc, p["wsa"], (1, 1),
                                  ((_SA_PAD, _SA_PAD), (_SA_PAD, _SA_PAD)),
                                  dimension_numbers=("NCHW", "OIHW", "NCHW"),
                                  precision=hp)
    return y * jax.nn.sigmoid(sa)


if __name__ == "__main__":
    key = jax.random.PRNGKey(0)
    ks = jax.random.split(key, 10)

    N, C, H, W = 2, 32, 16, 16          # channels=32 so reduction=16 -> Cr=2
    R = 16
    Cr = C // R

    feat_local = jax.random.normal(ks[0], (N, C, H, W), jnp.float32)
    feat_global = jax.random.normal(ks[1], (N, C, H, W), jnp.float32)

    params = dict(
        w1=0.1 * jax.random.normal(ks[2], (C, 2 * C), jnp.float32),       # Conv2d(2C, C, 1) weight
        gamma=1.0 + 0.1 * jax.random.normal(ks[3], (C,), jnp.float32),    # BN affine
        beta=0.1 * jax.random.normal(ks[4], (C,), jnp.float32),
        mean=0.1 * jax.random.normal(ks[5], (C,), jnp.float32),           # BN running stats
        var=0.5 + jnp.abs(jax.random.normal(ks[6], (C,), jnp.float32)),
        wfc1=0.2 * jax.random.normal(ks[7], (Cr, C), jnp.float32),        # CA fc1 (Cr, C, 1, 1)
        wfc2=0.2 * jax.random.normal(ks[8], (C, Cr), jnp.float32),        # CA fc2 (C, Cr, 1, 1)
        wsa=0.1 * jax.random.normal(ks[9], (1, 2, _SA_K, _SA_K), jnp.float32),  # SA conv weight
    )

    out = fusion_module_forward(feat_local, feat_global, params)
    out = jax.block_until_ready(out)

    ref = reference_forward(feat_local, feat_global, params)
    assert out.shape == (N, C, H, W), out.shape
    max_err = float(jnp.max(jnp.abs(out - ref)))
    # The kernel runs bf16-operand matmuls (default MXU precision / bf16 activation DMAs) while
    # the reference is f32-HIGHEST; tolerance is loosened from 5e-3 accordingly.
    if not max_err < 3e-2:
        raise AssertionError(f"Pallas kernel mismatch vs reference: max abs err = {max_err}")

    print("KERNEL_OK")
</pallas_src>

<mosaic_0001>
module attributes {stable_mosaic.version = 11 : i64} {
  func.func @_fusion_cbam_kernel(%arg0: i32, %arg1: memref<1x32x256xbf16, #tpu.memory_space<vmem>>, %arg2: memref<1x32x256xbf16, #tpu.memory_space<vmem>>, %arg3: memref<32x32xbf16, #tpu.memory_space<vmem>>, %arg4: memref<32x32xbf16, #tpu.memory_space<vmem>>, %arg5: memref<32x1xf32, #tpu.memory_space<vmem>>, %arg6: memref<2x32xf32, #tpu.memory_space<vmem>>, %arg7: memref<32x2xf32, #tpu.memory_space<vmem>>, %arg8: memref<512x256xf32, #tpu.memory_space<vmem>>, %arg9: memref<1x32x256xf32, #tpu.memory_space<vmem>>) attributes {dimension_semantics = [#tpu.dimension_semantics<parallel>], iteration_bounds = array<i64: 2>, scalar_prefetch = 0 : i64, scratch_operands = 0 : i64, tpu.core_type = #tpu.core_type<tc>, window_params = [{transform_indices = @transform_0, window_bounds = array<i64: 1, 32, 256>}, {transform_indices = @transform_1, window_bounds = array<i64: 1, 32, 256>}, {pipeline_mode = #tpu.pipeline_mode<synchronous>, transform_indices = @transform_2, window_bounds = array<i64: 32, 32>}, {pipeline_mode = #tpu.pipeline_mode<synchronous>, transform_indices = @transform_3, window_bounds = array<i64: 32, 32>}, {pipeline_mode = #tpu.pipeline_mode<synchronous>, transform_indices = @transform_4, window_bounds = array<i64: 32, 1>}, {pipeline_mode = #tpu.pipeline_mode<synchronous>, transform_indices = @transform_5, window_bounds = array<i64: 2, 32>}, {pipeline_mode = #tpu.pipeline_mode<synchronous>, transform_indices = @transform_6, window_bounds = array<i64: 32, 2>}, {pipeline_mode = #tpu.pipeline_mode<synchronous>, transform_indices = @transform_7, window_bounds = array<i64: 512, 256>}, {transform_indices = @transform_8, window_bounds = array<i64: 1, 32, 256>}]} {
    %c0 = arith.constant 0 : index
    %c0_0 = arith.constant 0 : index
    %c0_1 = arith.constant 0 : index
    %0 = vector.load %arg1[%c0, %c0_0, %c0_1] : memref<1x32x256xbf16, #tpu.memory_space<vmem>>, vector<1x32x256xbf16>
    %1 = vector.shape_cast %0 : vector<1x32x256xbf16> to vector<32x256xbf16>
    %c0_2 = arith.constant 0 : index
    %c0_3 = arith.constant 0 : index
    %c0_4 = arith.constant 0 : index
    %2 = vector.load %arg2[%c0_2, %c0_3, %c0_4] : memref<1x32x256xbf16, #tpu.memory_space<vmem>>, vector<1x32x256xbf16>
    %3 = vector.shape_cast %2 : vector<1x32x256xbf16> to vector<32x256xbf16>
    %c0_5 = arith.constant 0 : index
    %c0_6 = arith.constant 0 : index
    %4 = vector.load %arg3[%c0_5, %c0_6] : memref<32x32xbf16, #tpu.memory_space<vmem>>, vector<32x32xbf16>
    %cst = arith.constant dense<0.000000e+00> : vector<32x256xf32>
    %5 = tpu.matmul %4, %1, %cst {dimension_numbers = #tpu.dot_dimension_numbers<[1], [0], [0], [1], [0, 0, 1, 1], [], []>} : vector<32x32xbf16>, vector<32x256xbf16>, vector<32x256xf32> -> vector<32x256xf32>
    %c0_7 = arith.constant 0 : index
    %c0_8 = arith.constant 0 : index
    %6 = vector.load %arg4[%c0_7, %c0_8] : memref<32x32xbf16, #tpu.memory_space<vmem>>, vector<32x32xbf16>
    %cst_9 = arith.constant dense<0.000000e+00> : vector<32x256xf32>
    %7 = tpu.matmul %6, %3, %cst_9 {dimension_numbers = #tpu.dot_dimension_numbers<[1], [0], [0], [1], [0, 0, 1, 1], [], []>} : vector<32x32xbf16>, vector<32x256xbf16>, vector<32x256xf32> -> vector<32x256xf32>
    %8 = arith.addf %5, %7 : vector<32x256xf32>
    %c0_10 = arith.constant 0 : index
    %c0_11 = arith.constant 0 : index
    %9 = vector.load %arg5[%c0_10, %c0_11] : memref<32x1xf32, #tpu.memory_space<vmem>>, vector<32x1xf32>
    %10 = vector.broadcast %9 : vector<32x1xf32> to vector<32x256xf32>
    %11 = arith.addf %8, %10 : vector<32x256xf32>
    %cst_12 = arith.constant 0.000000e+00 : f32
    %12 = vector.broadcast %cst_12 : f32 to vector<32x256xf32>
    %13 = arith.maximumf %11, %12 : vector<32x256xf32>
    %cst_13 = arith.constant dense<0.000000e+00> : vector<32xf32>
    %14 = vector.multi_reduction <add>, %13, %cst_13 [1] : vector<32x256xf32> to vector<32xf32>
    %15 = vector.shape_cast %14 : vector<32xf32> to vector<32x1xf32>
    %cst_14 = arith.constant 2.560000e+02 : f32
    %16 = vector.broadcast %cst_14 : f32 to vector<32x1xf32>
    %17 = arith.divf %15, %16 : vector<32x1xf32>
    %cst_15 = arith.constant dense<0xFF800000> : vector<32xf32>
    %18 = vector.multi_reduction <maximumf>, %13, %cst_15 [1] : vector<32x256xf32> to vector<32xf32>
    %19 = vector.shape_cast %18 : vector<32xf32> to vector<32x1xf32>
    %20 = tpu.iota {dimensions = array<i32: 1>} : vector<32x2xi32>
    %c0_i32 = arith.constant 0 : i32
    %21 = vector.broadcast %c0_i32 : i32 to vector<32x2xi32>
    %22 = arith.cmpi eq, %20, %21 : vector<32x2xi32>
    %23 = vector.shape_cast %17 : vector<32x1xf32> to vector<32x1xf32>
    %24 = vector.broadcast %23 : vector<32x1xf32> to vector<32x2xf32>
    %25 = vector.shape_cast %19 : vector<32x1xf32> to vector<32x1xf32>
    %26 = vector.broadcast %25 : vector<32x1xf32> to vector<32x2xf32>
    %27 = arith.select %22, %24, %26 : vector<32x2xi1>, vector<32x2xf32>
    %c0_16 = arith.constant 0 : index
    %c0_17 = arith.constant 0 : index
    %28 = vector.load %arg6[%c0_16, %c0_17] : memref<2x32xf32, #tpu.memory_space<vmem>>, vector<2x32xf32>
    %cst_18 = arith.constant dense<0.000000e+00> : vector<2x2xf32>
    %29 = tpu.matmul %28, %27, %cst_18 {dimension_numbers = #tpu.dot_dimension_numbers<[1], [0], [0], [1], [0, 0, 1, 1], [], []>} : vector<2x32xf32>, vector<32x2xf32>, vector<2x2xf32> -> vector<2x2xf32>
    %cst_19 = arith.constant 0.000000e+00 : f32
    %30 = vector.broadcast %cst_19 : f32 to vector<2x2xf32>
    %31 = arith.maximumf %29, %30 : vector<2x2xf32>
    %c0_20 = arith.constant 0 : index
    %c0_21 = arith.constant 0 : index
    %32 = vector.load %arg7[%c0_20, %c0_21] : memref<32x2xf32, #tpu.memory_space<vmem>>, vector<32x2xf32>
    %cst_22 = arith.constant dense<0.000000e+00> : vector<32x2xf32>
    %33 = tpu.matmul %32, %31, %cst_22 {dimension_numbers = #tpu.dot_dimension_numbers<[1], [0], [0], [1], [0, 0, 1, 1], [], []>} : vector<32x2xf32>, vector<2x2xf32>, vector<32x2xf32> -> vector<32x2xf32>
    %cst_23 = arith.constant dense<0.000000e+00> : vector<32xf32>
    %34 = vector.multi_reduction <add>, %33, %cst_23 [1] : vector<32x2xf32> to vector<32xf32>
    %35 = vector.shape_cast %34 : vector<32xf32> to vector<32x1xf32>
    %36 = arith.negf %35 : vector<32x1xf32>
    %37 = math.exp %36 : vector<32x1xf32>
    %cst_24 = arith.constant 1.000000e+00 : f32
    %38 = vector.broadcast %cst_24 : f32 to vector<32x1xf32>
    %39 = arith.addf %38, %37 : vector<32x1xf32>
    %40 = arith.divf %38, %39 : vector<32x1xf32>
    %41 = vector.broadcast %40 : vector<32x1xf32> to vector<32x256xf32>
    %42 = arith.mulf %13, %41 : vector<32x256xf32>
    %cst_25 = arith.constant dense<0.000000e+00> : vector<256xf32>
    %43 = vector.multi_reduction <add>, %42, %cst_25 [0] : vector<32x256xf32> to vector<256xf32>
    %44 = vector.shape_cast %43 : vector<256xf32> to vector<1x256xf32>
    %cst_26 = arith.constant 3.200000e+01 : f32
    %45 = vector.broadcast %cst_26 : f32 to vector<1x256xf32>
    %46 = arith.divf %44, %45 : vector<1x256xf32>
    %cst_27 = arith.constant dense<0xFF800000> : vector<256xf32>
    %47 = vector.multi_reduction <maximumf>, %42, %cst_27 [0] : vector<32x256xf32> to vector<256xf32>
    %48 = vector.shape_cast %47 : vector<256xf32> to vector<1x256xf32>
    %49 = tpu.concatenate %46, %48 in 1 : vector<1x256xf32>, vector<1x256xf32> -> vector<1x512xf32>
    %c0_28 = arith.constant 0 : index
    %c0_29 = arith.constant 0 : index
    %50 = vector.load %arg8[%c0_28, %c0_29] : memref<512x256xf32, #tpu.memory_space<vmem>>, vector<512x256xf32>
    %cst_30 = arith.constant dense<0.000000e+00> : vector<1x256xf32>
    %51 = tpu.matmul %49, %50, %cst_30 {dimension_numbers = #tpu.dot_dimension_numbers<[1], [0], [0], [1], [0, 0, 1, 1], [], []>} : vector<1x512xf32>, vector<512x256xf32>, vector<1x256xf32> -> vector<1x256xf32>
    %52 = arith.negf %51 : vector<1x256xf32>
    %53 = math.exp %52 : vector<1x256xf32>
    %cst_31 = arith.constant 1.000000e+00 : f32
    %54 = vector.broadcast %cst_31 : f32 to vector<1x256xf32>
    %55 = arith.addf %54, %53 : vector<1x256xf32>
    %56 = arith.divf %54, %55 : vector<1x256xf32>
    %57 = vector.broadcast %56 : vector<1x256xf32> to vector<32x256xf32>
    %58 = arith.mulf %42, %57 : vector<32x256xf32>
    %c0_32 = arith.constant 0 : index
    %c0_33 = arith.constant 0 : index
    %c0_34 = arith.constant 0 : index
    %59 = vector.load %arg9[%c0_32, %c0_33, %c0_34] : memref<1x32x256xf32, #tpu.memory_space<vmem>>, vector<1x32x256xf32>
    %60 = vector.shape_cast %59 : vector<1x32x256xf32> to vector<32x256xf32>
    %61 = vector.shape_cast %58 : vector<32x256xf32> to vector<1x32x256xf32>
    tpu.vector_store %arg9[%c0_32, %c0_33, %c0_34], %61 {strides = array<i32>} : memref<1x32x256xf32, #tpu.memory_space<vmem>>, vector<1x32x256xf32>,
    return
  }
  func.func @transform_0(%arg0: i32) -> (i32, i32, i32) {
    %c0_i32 = arith.constant 0 : i32
    %c0_i32_0 = arith.constant 0 : i32
    %c0_i32_1 = arith.constant 0 : i32
    return %arg0, %c0_i32, %c0_i32_0 : i32, i32, i32
  }
  func.func @transform_1(%arg0: i32) -> (i32, i32, i32) {
    %c0_i32 = arith.constant 0 : i32
    %c0_i32_0 = arith.constant 0 : i32
    %c0_i32_1 = arith.constant 0 : i32
    return %arg0, %c0_i32, %c0_i32_0 : i32, i32, i32
  }
  func.func @transform_2(%arg0: i32) -> (i32, i32) {
    %c0_i32 = arith.constant 0 : i32
    %c0_i32_0 = arith.constant 0 : i32
    %c0_i32_1 = arith.constant 0 : i32
    return %c0_i32, %c0_i32_0 : i32, i32
  }
  func.func @transform_3(%arg0: i32) -> (i32, i32) {
    %c0_i32 = arith.constant 0 : i32
    %c0_i32_0 = arith.constant 0 : i32
    %c0_i32_1 = arith.constant 0 : i32
    return %c0_i32, %c0_i32_0 : i32, i32
  }
  func.func @transform_4(%arg0: i32) -> (i32, i32) {
    %c0_i32 = arith.constant 0 : i32
    %c0_i32_0 = arith.constant 0 : i32
    %c0_i32_1 = arith.constant 0 : i32
    return %c0_i32, %c0_i32_0 : i32, i32
  }
  func.func @transform_5(%arg0: i32) -> (i32, i32) {
    %c0_i32 = arith.constant 0 : i32
    %c0_i32_0 = arith.constant 0 : i32
    %c0_i32_1 = arith.constant 0 : i32
    return %c0_i32, %c0_i32_0 : i32, i32
  }
  func.func @transform_6(%arg0: i32) -> (i32, i32) {
    %c0_i32 = arith.constant 0 : i32
    %c0_i32_0 = arith.constant 0 : i32
    %c0_i32_1 = arith.constant 0 : i32
    return %c0_i32, %c0_i32_0 : i32, i32
  }
  func.func @transform_7(%arg0: i32) -> (i32, i32) {
    %c0_i32 = arith.constant 0 : i32
    %c0_i32_0 = arith.constant 0 : i32
    %c0_i32_1 = arith.constant 0 : i32
    return %c0_i32, %c0_i32_0 : i32, i32
  }
  func.func @transform_8(%arg0: i32) -> (i32, i32, i32) {
    %c0_i32 = arith.constant 0 : i32
    %c0_i32_0 = arith.constant 0 : i32
    %c0_i32_1 = arith.constant 0 : i32
    return %arg0, %c0_i32, %c0_i32_0 : i32, i32, i32
  }
}

</mosaic_0001>

<llo_original>
// kernel: tpu_custom_call.1
$region0: #{tpu_custom_call.1}
  #allocation0 [shape = 'u32[]', space=smem, size = 0x4, offset = 0x4, fixed_abs, tag = 'smem constant byte address 0x4 - core index']
  #allocation1 [shape = 'u32[144,128]{1,0:T(1,128)}', space=vmem, size = 0x12000, scoped, tag = 'internal scratch']
  %s0 = inlined_call_operand.vmem [shape: bf16[2,32,256], index: 0, kind: input, shape index: {}]
  %s1 = inlined_call_operand.hbm [shape: bf16[2,32,256], index: 1, kind: input, shape index: {}]
  %s2 = inlined_call_operand.hbm [shape: bf16[32,32], index: 2, kind: input, shape index: {}]
  %s3 = inlined_call_operand.hbm [shape: bf16[32,32], index: 3, kind: input, shape index: {}]
  %s4 = inlined_call_operand.vmem [shape: f32[32,1], index: 4, kind: input, shape index: {}]
  %s5 = inlined_call_operand.vmem [shape: f32[2,32], index: 5, kind: input, shape index: {}]
  %s6 = inlined_call_operand.vmem [shape: f32[32,2], index: 6, kind: input, shape index: {}]
  %s7 = inlined_call_operand.hbm [shape: f32[512,256], index: 7, kind: input, shape index: {}]
  %s8 = inlined_call_operand.hbm [shape: f32[2,32,256], index: 8, kind: output, shape index: {}]
  %s9 = sld [smem:[#allocation0]]
  $region81: #{tpu_custom_call.1} parent=0
    _
  %s11 = ssub.s32 1, %s9
  %s12 = scalar_select 0, %s11, %s9
  $region1: #{tpu_custom_call.1} parent=0
    #allocation2 [shape = 'u8[32768]{0}', space=vmem, size = 0x8000, scoped, tag = 'input window, operand 1']
    #allocation3 [shape = 's32[2]{0}', space=sflag, size = 0x8, scoped, tag = 'scoped memory for tpu_custom_call.1']
    #allocation4 [shape = 's32[2]{0}', space=sflag, size = 0x8, scoped, tag = 'scoped memory for tpu_custom_call.1']
    #allocation5 [shape = 'u8[8192]{0}', space=vmem, size = 0x2000, scoped, tag = 'input window, operand 2, single buffered']
    #allocation6 [shape = 's32[1]{0}', space=sflag, size = 0x4, scoped, tag = 'scoped memory for tpu_custom_call.1']
    #allocation7 [shape = 'u8[8192]{0}', space=vmem, size = 0x2000, scoped, tag = 'input window, operand 3, single buffered']
    #allocation8 [shape = 'u8[524288]{0}', space=vmem, size = 0x80000, scoped, tag = 'input window, operand 7, single buffered']
    #allocation9 [shape = 's32[1]{0}', space=sflag, size = 0x4, scoped, tag = 'scoped memory for tpu_custom_call.1']
    #allocation10 [shape = 'u8[65536]{0}', space=vmem, size = 0x10000, scoped, tag = 'output window, operand 0']
    %13 = vsyncpa [#allocation3], 0
    %s14 = scalar_lea.sflag [#allocation3], 1
    %15 = vsyncpa %s14, 0
    %16 = vsyncpa [#allocation6], 0
    %17 = vsyncpa [#allocation9], 0
    %18 = vsyncpa [#allocation4], 0
    %s19 = scalar_lea.sflag [#allocation4], 1
    %20 = vsyncpa %s19, 0
    loop: start=0, step=1, limit=4
    $region2: #{tpu_custom_call.1} parent=1 // loop_pre_header
      _
    $region3: #{tpu_custom_call.1} parent=1 // loop_header
      %s22 = sphi 0, %s26
      %p23 = scmp.ge.s32.totalorder %s22, 4
      %s32 = sphi 0, %s34
      %s35 = sphi 0, %s32
      %s36 = sphi 0, %s35
      %s52 = sphi 0, %s36
      %s58 = sphi 0, %s60
      %s61 = sphi 0, %s58
      %s62 = sphi 0, %s61
      %s78 = sphi 0, %s62
      %s82 = sphi 0, %s82
      %s84 = sphi 0, %s82
      %s85 = sphi 0, %s84
      %s99 = sphi 0, %s85
      %s103 = sphi 0, %s103
      %s105 = sphi 0, %s103
      %s106 = sphi 0, %s105
      %s120 = sphi 0, %s106
      %s124 = sphi 0, %s124
      %s126 = sphi 0, %s124
      %s127 = sphi 0, %s126
      %s141 = sphi 0, %s127
      %s145 = sphi 0, %s145
      %s147 = sphi 0, %s145
      %s148 = sphi 0, %s147
      %s162 = sphi 0, %s148
      %s166 = sphi 0, %s166
      %s168 = sphi 0, %s166
      %s169 = sphi 0, %s168
      %s183 = sphi 0, %s169
      %s187 = sphi 0, %s187
      %s189 = sphi 0, %s187
      %s190 = sphi 0, %s189
      %s204 = sphi 0, %s190
      %s210 = sphi 0, %s212
      %s213 = sphi 0, %s210
      %s214 = sphi 0, %s213
      %s230 = sphi 0, %s214
    $region4: #{tpu_custom_call.1} parent=1 // loop_header_branch
      %25 = sbr.rel (%p23) target = $region8
    $region5: #{tpu_custom_call.1} parent=1 // loop_body
      %s27 = ssub.s32 %s22, 1
      %s28 = ssub.s32 %s22, 2
      %s29 = sadd.s32 %s22, 1
      %s30 = ssub.s32 %s22, %s29
      %p31 = scmp.eq.s32.totalorder %s30, 0
      %s33 = sadd.s32 %s32, 1
      %s34 = scalar_select %p31, %s32, %s33
      %p37 = pneg %p31
      %p38 = scmp.eq.s32.totalorder %s22, 1
      %p39 = por %p37, %p38
      %p40 = scmp.ne.s32.totalorder %s32, %s35
      %p41 = scmp.eq.s32.totalorder %s22, 0
      %p42 = por %p40, %p41
      %p43 = scmp.ne.s32.totalorder %s32, %s35
      %p44 = scmp.eq.s32.totalorder %s27, 1
      %p45 = por %p43, %p44
      %p46 = scmp.ne.s32.totalorder %s35, %s36
      %p47 = scmp.eq.s32.totalorder %s27, 0
      %p48 = por %p46, %p47
      %p49 = scmp.ne.s32.totalorder %s35, %s36
      %p50 = scmp.eq.s32.totalorder %s28, 1
      %p51 = por %p49, %p50
      %p53 = scmp.ne.s32.totalorder %s36, %s52
      %p54 = scmp.eq.s32.totalorder %s28, 0
      %p55 = por %p53, %p54
      %s56 = ssub.s32 %s22, %s29
      %p57 = scmp.eq.s32.totalorder %s56, 0
      %s59 = sadd.s32 %s58, 1
      %s60 = scalar_select %p57, %s58, %s59
      %p63 = pneg %p57
      %p64 = scmp.eq.s32.totalorder %s22, 1
      %p65 = por %p63, %p64
      %p66 = scmp.ne.s32.totalorder %s58, %s61
      %p67 = scmp.eq.s32.totalorder %s22, 0
      %p68 = por %p66, %p67
      %p69 = scmp.ne.s32.totalorder %s58, %s61
      %p70 = scmp.eq.s32.totalorder %s27, 1
      %p71 = por %p69, %p70
      %p72 = scmp.ne.s32.totalorder %s61, %s62
      %p73 = scmp.eq.s32.totalorder %s27, 0
      %p74 = por %p72, %p73
      %p75 = scmp.ne.s32.totalorder %s61, %s62
      %p76 = scmp.eq.s32.totalorder %s28, 1
      %p77 = por %p75, %p76
      %p79 = scmp.ne.s32.totalorder %s62, %s78
      %p80 = scmp.eq.s32.totalorder %s28, 0
      %p81 = por %p79, %p80
      %s83 = sadd.s32 %s82, 1
      %p86 = scmp.eq.s32.totalorder %s22, 1
      %p87 = scmp.ne.s32.totalorder %s82, %s84
      %p88 = scmp.eq.s32.totalorder %s22, 0
      %p89 = por %p87, %p88
      %p90 = scmp.ne.s32.totalorder %s82, %s84
      %p91 = scmp.eq.s32.totalorder %s27, 1
      %p92 = por %p90, %p91
      %p93 = scmp.ne.s32.totalorder %s84, %s85
      %p94 = scmp.eq.s32.totalorder %s27, 0
      %p95 = por %p93, %p94
      %p96 = scmp.ne.s32.totalorder %s84, %s85
      %p97 = scmp.eq.s32.totalorder %s28, 1
      %p98 = por %p96, %p97
      %p100 = scmp.ne.s32.totalorder %s85, %s99
      %p101 = scmp.eq.s32.totalorder %s28, 0
      %p102 = por %p100, %p101
      %s104 = sadd.s32 %s103, 1
      %p107 = scmp.eq.s32.totalorder %s22, 1
      %p108 = scmp.ne.s32.totalorder %s103, %s105
      %p109 = scmp.eq.s32.totalorder %s22, 0
      %p110 = por %p108, %p109
      %p111 = scmp.ne.s32.totalorder %s103, %s105
      %p112 = scmp.eq.s32.totalorder %s27, 1
      %p113 = por %p111, %p112
      %p114 = scmp.ne.s32.totalorder %s105, %s106
      %p115 = scmp.eq.s32.totalorder %s27, 0
      %p116 = por %p114, %p115
      %p117 = scmp.ne.s32.totalorder %s105, %s106
      %p118 = scmp.eq.s32.totalorder %s28, 1
      %p119 = por %p117, %p118
      %p121 = scmp.ne.s32.totalorder %s106, %s120
      %p122 = scmp.eq.s32.totalorder %s28, 0
      %p123 = por %p121, %p122
      %s125 = sadd.s32 %s124, 1
      %p128 = scmp.eq.s32.totalorder %s22, 1
      %p129 = scmp.ne.s32.totalorder %s124, %s126
      %p130 = scmp.eq.s32.totalorder %s22, 0
      %p131 = por %p129, %p130
      %p132 = scmp.ne.s32.totalorder %s124, %s126
      %p133 = scmp.eq.s32.totalorder %s27, 1
      %p134 = por %p132, %p133
      %p135 = scmp.ne.s32.totalorder %s126, %s127
      %p136 = scmp.eq.s32.totalorder %s27, 0
      %p137 = por %p135, %p136
      %p138 = scmp.ne.s32.totalorder %s126, %s127
      %p139 = scmp.eq.s32.totalorder %s28, 1
      %p140 = por %p138, %p139
      %p142 = scmp.ne.s32.totalorder %s127, %s141
      %p143 = scmp.eq.s32.totalorder %s28, 0
      %p144 = por %p142, %p143
      %s146 = sadd.s32 %s145, 1
      %p149 = scmp.eq.s32.totalorder %s22, 1
      %p150 = scmp.ne.s32.totalorder %s145, %s147
      %p151 = scmp.eq.s32.totalorder %s22, 0
      %p152 = por %p150, %p151
      %p153 = scmp.ne.s32.totalorder %s145, %s147
      %p154 = scmp.eq.s32.totalorder %s27, 1
      %p155 = por %p153, %p154
      %p156 = scmp.ne.s32.totalorder %s147, %s148
      %p157 = scmp.eq.s32.totalorder %s27, 0
      %p158 = por %p156, %p157
      %p159 = scmp.ne.s32.totalorder %s147, %s148
      %p160 = scmp.eq.s32.totalorder %s28, 1
      %p161 = por %p159, %p160
      %p163 = scmp.ne.s32.totalorder %s148, %s162
      %p164 = scmp.eq.s32.totalorder %s28, 0
      %p165 = por %p163, %p164
      %s167 = sadd.s32 %s166, 1
      %p170 = scmp.eq.s32.totalorder %s22, 1
      %p171 = scmp.ne.s32.totalorder %s166, %s168
      %p172 = scmp.eq.s32.totalorder %s22, 0
      %p173 = por %p171, %p172
      %p174 = scmp.ne.s32.totalorder %s166, %s168
      %p175 = scmp.eq.s32.totalorder %s27, 1
      %p176 = por %p174, %p175
      %p177 = scmp.ne.s32.totalorder %s168, %s169
      %p178 = scmp.eq.s32.totalorder %s27, 0
      %p179 = por %p177, %p178
      %p180 = scmp.ne.s32.totalorder %s168, %s169
      %p181 = scmp.eq.s32.totalorder %s28, 1
      %p182 = por %p180, %p181
      %p184 = scmp.ne.s32.totalorder %s169, %s183
      %p185 = scmp.eq.s32.totalorder %s28, 0
      %p186 = por %p184, %p185
      %s188 = sadd.s32 %s187, 1
      %p191 = scmp.eq.s32.totalorder %s22, 1
      %p192 = scmp.ne.s32.totalorder %s187, %s189
      %p193 = scmp.eq.s32.totalorder %s22, 0
      %p194 = por %p192, %p193
      %p195 = scmp.ne.s32.totalorder %s187, %s189
      %p196 = scmp.eq.s32.totalorder %s27, 1
      %p197 = por %p195, %p196
      %p198 = scmp.ne.s32.totalorder %s189, %s190
      %p199 = scmp.eq.s32.totalorder %s27, 0
      %p200 = por %p198, %p199
      %p201 = scmp.ne.s32.totalorder %s189, %s190
      %p202 = scmp.eq.s32.totalorder %s28, 1
      %p203 = por %p201, %p202
      %p205 = scmp.ne.s32.totalorder %s190, %s204
      %p206 = scmp.eq.s32.totalorder %s28, 0
      %p207 = por %p205, %p206
      %s208 = ssub.s32 %s22, %s29
      %p209 = scmp.eq.s32.totalorder %s208, 0
      %s211 = sadd.s32 %s210, 1
      %s212 = scalar_select %p209, %s210, %s211
      %p215 = pneg %p209
      %p216 = scmp.eq.s32.totalorder %s22, 1
      %p217 = por %p215, %p216
      %p218 = scmp.ne.s32.totalorder %s210, %s213
      %p219 = scmp.eq.s32.totalorder %s22, 0
      %p220 = por %p218, %p219
      %p221 = scmp.ne.s32.totalorder %s210, %s213
      %p222 = scmp.eq.s32.totalorder %s27, 1
      %p223 = por %p221, %p222
      %p224 = scmp.ne.s32.totalorder %s213, %s214
      %p225 = scmp.eq.s32.totalorder %s27, 0
      %p226 = por %p224, %p225
      %p227 = scmp.ne.s32.totalorder %s213, %s214
      %p228 = scmp.eq.s32.totalorder %s28, 1
      %p229 = por %p227, %p228
      %p231 = scmp.ne.s32.totalorder %s214, %s230
      %p232 = scmp.eq.s32.totalorder %s28, 0
      %p233 = por %p231, %p232
      %p234 = scmp.le.s32.totalorder 1, %s22
      %p235 = scmp.lt.s32.totalorder %s22, 3
      %p236 = pnand %p234, %p235
      %p237 = pneg %p236
      // Predicated region
      $region9: #{tpu_custom_call.1} parent=5 // pred_check
        _
      $region10: #{tpu_custom_call.1} parent=5 // pred_check_branch
        %239 = sbr.rel (%p236) target = $region12
      $region11: #{tpu_custom_call.1} parent=5 // pred_region
        %s240 = ssub.s32 %s22, 1
        // Predicated region
        $region13: #{tpu_custom_call.1} parent=11 // pred_check
          %p241 = pneg %p95
        $region14: #{tpu_custom_call.1} parent=11 // pred_check_branch
          %243 = sbr.rel (%p241) target = $region16
        $region15: #{tpu_custom_call.1} parent=11 // pred_region
          %s245 = ssub.s32 256, 256
          %246 = vsyncadd [#allocation6], %s245
          %s247 = sshll.u32 [#allocation5], 4
          %s248 = int_to_ptr.vmem [resolvable:$true] %s247
          %253 = dma.hbm_to_vmem [thread:$0]  %s2, 256, %s248, [#allocation6], 64, 64, 4
        $region16: #{tpu_custom_call.1} parent=11 // pred_fallthru
          _
        // Predicated region
        $region17: #{tpu_custom_call.1} parent=11 // pred_check
          %p254 = pneg %p116
        $region18: #{tpu_custom_call.1} parent=11 // pred_check_branch
          %256 = sbr.rel (%p254) target = $region20
        $region19: #{tpu_custom_call.1} parent=11 // pred_region
          %s258 = ssub.s32 256, 256
          %259 = vsyncadd [#allocation6], %s258
          %s260 = sshll.u32 [#allocation7], 4
          %s261 = int_to_ptr.vmem [resolvable:$true] %s260
          %266 = dma.hbm_to_vmem [thread:$0]  %s3, 256, %s261, [#allocation6], 64, 64, 4
        $region20: #{tpu_custom_call.1} parent=11 // pred_fallthru
          _
        // Predicated region
        $region21: #{tpu_custom_call.1} parent=11 // pred_check
          %p267 = pneg %p137
        $region22: #{tpu_custom_call.1} parent=11 // pred_check_branch
          %269 = sbr.rel (%p267) target = $region24
        $region23: #{tpu_custom_call.1} parent=11 // pred_region
          _
        $region24: #{tpu_custom_call.1} parent=11 // pred_fallthru
          _
        // Predicated region
        $region25: #{tpu_custom_call.1} parent=11 // pred_check
          %p270 = pneg %p158
        $region26: #{tpu_custom_call.1} parent=11 // pred_check_branch
          %272 = sbr.rel (%p270) target = $region28
        $region27: #{tpu_custom_call.1} parent=11 // pred_region
          _
        $region28: #{tpu_custom_call.1} parent=11 // pred_fallthru
          _
        // Predicated region
        $region29: #{tpu_custom_call.1} parent=11 // pred_check
          %p273 = pneg %p179
        $region30: #{tpu_custom_call.1} parent=11 // pred_check_branch
          %275 = sbr.rel (%p273) target = $region32
        $region31: #{tpu_custom_call.1} parent=11 // pred_region
          _
        $region32: #{tpu_custom_call.1} parent=11 // pred_fallthru
          _
        // Predicated region
        $region33: #{tpu_custom_call.1} parent=11 // pred_check
          %p276 = pneg %p200
        $region34: #{tpu_custom_call.1} parent=11 // pred_check_branch
          %278 = sbr.rel (%p276) target = $region36
        $region35: #{tpu_custom_call.1} parent=11 // pred_region
          %s280 = ssub.s32 16384, 16384
          %281 = vsyncadd [#allocation9], %s280
          %s282 = sshll.u32 [#allocation8], 4
          %s283 = int_to_ptr.vmem [resolvable:$true] %s282
          %288 = dma.hbm_to_vmem [thread:$0]  %s7, 16384, %s283, [#allocation9], 256, 256, 16
        $region36: #{tpu_custom_call.1} parent=11 // pred_fallthru
          _
      $region12: #{tpu_custom_call.1} parent=5 // pred_fallthru
        _
      %p289 = scmp.lt.s32.totalorder %s22, 2
      // Predicated region
      $region37: #{tpu_custom_call.1} parent=5 // pred_check
        %p290 = pneg %p289
      $region38: #{tpu_custom_call.1} parent=5 // pred_check_branch
        %292 = sbr.rel (%p290) target = $region40
      $region39: #{tpu_custom_call.1} parent=5 // pred_region
        // Predicated region
        $region41: #{tpu_custom_call.1} parent=39 // pred_check
          %p293 = pneg %p42
        $region42: #{tpu_custom_call.1} parent=39 // pred_check_branch
          %295 = sbr.rel (%p293) target = $region44
        $region43: #{tpu_custom_call.1} parent=39 // pred_region
          %p296 = scmp.lt.s32.totalorder %s22, 1
          %s297 = scalar_select %p296, %s22, 1
          %s298 = smul.addr %s297, 8
          %s299 = smul.addr %s298, 4
          %s300 = scalar_lea.vmem %s0, %s299
        $region44: #{tpu_custom_call.1} parent=39 // pred_fallthru
          _
        // Predicated region
        $region45: #{tpu_custom_call.1} parent=39 // pred_check
          %p301 = pneg %p68
        $region46: #{tpu_custom_call.1} parent=39 // pred_check_branch
          %303 = sbr.rel (%p301) target = $region48
        $region47: #{tpu_custom_call.1} parent=39 // pred_region
          %s304 = sand.u32 %s58, 1
          %s305 = scalar_lea.sflag [#allocation3], %s304
          %s306 = sand.u32 %s58, 1
          %s307 = smul.addr %s306, 32
          %s308 = scalar_lea.vmem [#allocation2], %s307
          %s310 = ssub.s32 512, 512
          %311 = vsyncadd %s305, %s310
          %s312 = smul.addr %s22, 8
          %s313 = smul.addr %s312, 64
          %s314 = scalar_lea.hbm %s1, %s313
          %s315 = sshll.u32 %s308, 4
          %s316 = int_to_ptr.vmem [resolvable:$true] %s315
          %321 = dma.hbm_to_vmem [thread:$0]  %s314, 512, %s316, %s305, 128, 128, 8
        $region48: #{tpu_custom_call.1} parent=39 // pred_fallthru
          _
      $region40: #{tpu_custom_call.1} parent=5 // pred_fallthru
        _
      %p322 = scmp.le.s32.totalorder 1, %s22
      %p323 = scmp.lt.s32.totalorder %s22, 3
      %p324 = pnand %p322, %p323
      %p325 = pneg %p324
      // Predicated region
      $region49: #{tpu_custom_call.1} parent=5 // pred_check
        _
      $region50: #{tpu_custom_call.1} parent=5 // pred_check_branch
        %327 = sbr.rel (%p324) target = $region52
      $region51: #{tpu_custom_call.1} parent=5 // pred_region
        %s328 = ssub.s32 %s22, 1
        %s329 = sand.u32 %s61, 1
        %s330 = scalar_lea.sflag [#allocation3], %s329
        %s331 = sand.u32 %s61, 1
        %s332 = smul.addr %s331, 32
        %s333 = scalar_lea.vmem [#allocation2], %s332
        // Predicated region
        $region53: #{tpu_custom_call.1} parent=51 // pred_check
          %p334 = pneg %p74
        $region54: #{tpu_custom_call.1} parent=51 // pred_check_branch
          %336 = sbr.rel (%p334) target = $region56
        $region55: #{tpu_custom_call.1} parent=51 // pred_region
          %337 = dma.done %s330, 512
        $region56: #{tpu_custom_call.1} parent=51 // pred_fallthru
          _
        // Predicated region
        $region57: #{tpu_custom_call.1} parent=51 // pred_check
          %p338 = pneg %p95
        $region58: #{tpu_custom_call.1} parent=51 // pred_check_branch
          %340 = sbr.rel (%p338) target = $region60
        $region59: #{tpu_custom_call.1} parent=51 // pred_region
          %341 = dma.done [#allocation6], 256
        $region60: #{tpu_custom_call.1} parent=51 // pred_fallthru
          _
        // Predicated region
        $region61: #{tpu_custom_call.1} parent=51 // pred_check
          %p342 = pneg %p116
        $region62: #{tpu_custom_call.1} parent=51 // pred_check_branch
          %344 = sbr.rel (%p342) target = $region64
        $region63: #{tpu_custom_call.1} parent=51 // pred_region
          %345 = dma.done [#allocation6], 256
        $region64: #{tpu_custom_call.1} parent=51 // pred_fallthru
          _
        // Predicated region
        $region65: #{tpu_custom_call.1} parent=51 // pred_check
          %p346 = pneg %p200
        $region66: #{tpu_custom_call.1} parent=51 // pred_check_branch
          %348 = sbr.rel (%p346) target = $region68
        $region67: #{tpu_custom_call.1} parent=51 // pred_region
          %349 = dma.done [#allocation9], 16384
        $region68: #{tpu_custom_call.1} parent=51 // pred_fallthru
          _
        %p350 = scmp.lt.s32.totalorder %s27, 1
        %s351 = scalar_select %p350, %s27, 1
        %s352 = smul.addr %s351, 8
        %s353 = smul.addr %s352, 4
        %s354 = scalar_lea.vmem %s0, %s353
        %p355 = pneg %p48
        %p356 = pneg %p45
        %s357 = sand.u32 %s61, 1
        %s358 = scalar_lea.sflag [#allocation3], %s357
        %s359 = sand.u32 %s61, 1
        %s360 = smul.addr %s359, 32
        %s361 = scalar_lea.vmem [#allocation2], %s360
        %p362 = pneg %p74
        %p363 = pneg %p71
        %p364 = pneg %p95
        %p365 = pneg %p92
        %p366 = pneg %p116
        %p367 = pneg %p113
        %p368 = pneg %p137
        %p369 = pneg %p134
        %p370 = pneg %p158
        %p371 = pneg %p155
        %p372 = pneg %p179
        %p373 = pneg %p176
        %p374 = pneg %p200
        %p375 = pneg %p197
        %p376 = pneg %p226
        %p377 = pneg %p223
        %s378 = sand.u32 %s213, 1
        %s379 = scalar_lea.sflag [#allocation4], %s378
        %s380 = sand.u32 %s213, 1
        %s381 = smul.addr %s380, 64
        %s382 = scalar_lea.vmem [#allocation10], %s381
        %p383 = scmp.lt.s32.totalorder %s27, 1
        %s384 = scalar_select %p383, %s27, 1
        %s385 = smul.addr %s384, 8
        %s386 = smul.addr %s385, 4
        %s387 = scalar_lea.vmem %s0, %s386
        %v389 = vld [vmem:[%s387] sm:$0xff]
        %v390 = vld [vmem:[%s387 + $0x8] sm:$0xff]
        %v391 = vld [vmem:[%s387 + $0x10] sm:$0xff]
        %v392 = vld [vmem:[%s387 + $0x18] sm:$0xff]
        %v393 = vld [vmem:[%s333] sm:$0xff]
        %v394 = vld [vmem:[%s333 + $0x8] sm:$0xff]
        %v395 = vld [vmem:[%s333 + $0x10] sm:$0xff]
        %v396 = vld [vmem:[%s333 + $0x18] sm:$0xff]
        %v397 = vld [vmem:[#allocation5] sm:$0xf]
        %v398 = vld [vmem:[#allocation5 + $0x4] sm:$0xf]
        %v399 = vld [vmem:[#allocation5 + $0x8] sm:$0xf]
        %v400 = vld [vmem:[#allocation5 + $0xc] sm:$0xf]
        %v401 = vld [vmem:[#allocation7] sm:$0xf]
        %v402 = vld [vmem:[#allocation7 + $0x4] sm:$0xf]
        %v403 = vld [vmem:[#allocation7 + $0x8] sm:$0xf]
        %v404 = vld [vmem:[#allocation7 + $0xc] sm:$0xf]
        %v409 = vunpack.c.l.b16 %v401
        %v410 = vunpack.c.l.b16 %v402
        %v411 = vunpack.c.l.b16 %v403
        %v412 = vunpack.c.l.b16 %v404
        %v413 = vpack.c.b16 %v410, %v409
        %v414 = vpack.c.b16 %v412, %v411
        %v419 = vunpack.c.l.b16 %v393
        %v420 = vunpack.c.h.b16 %v393
        %v421 = vunpack.c.l.b16 %v394
        %v422 = vunpack.c.h.b16 %v394
        %v423 = vunpack.c.l.b16 %v395
        %v424 = vunpack.c.h.b16 %v395
        %v425 = vunpack.c.l.b16 %v396
        %v426 = vunpack.c.h.b16 %v396
        %v427 = vpack.c.b16 %v421, %v419
        %v428 = vpack.c.b16 %v422, %v420
        %v429 = vpack.c.b16 %v425, %v423
        %v430 = vpack.c.b16 %v426, %v424
        %vm435 = vcmask 261120
        %v437 = vsel %vm435, %v413, 0
        %v440 = vsel %vm435, %v414, 0
        %442 = vmatprep.subr.bf16.mxu0 %v428
        %443 = vmatpush1.bf16.msra.mxu0 %v427
        %444 = vmatprep.subr.bf16.mxu0 %v430
        %445 = vmatpush1.bf16.msra.mxu0 %v429
        %446 = vmatprep.subr.bf16.mxu0 0
        %447 = vmatpush1.bf16.msra.mxu0 0
        %448 = vmatprep.subr.bf16.mxu0 0
        %449 = vmatpush1.bf16.msra.mxu0 0
        %450 = vmatprep.subr.bf16.mxu0 0
        %451 = vmatpush1.bf16.msra.mxu0 0
        %452 = vmatprep.subr.bf16.mxu0 0
        %453 = vmatpush1.bf16.msra.mxu0 0
        %454 = vmatprep.subr.bf16.mxu0 0
        %455 = vmatpush1.bf16.msra.mxu0 0
        %456 = vmatprep.subr.bf16.mxu0 0
        %457 = vmatpush1.bf16.msra.mxu0 0
        %458 = vmatprep.subr.bf16.mxu0 0
        %459 = vmatpush1.bf16.msra.mxu0 0
        %460 = vmatprep.subr.bf16.mxu0 0
        %461 = vmatpush1.bf16.msra.mxu0 0
        %462 = vmatprep.subr.bf16.mxu0 0
        %463 = vmatpush1.bf16.msra.mxu0 0
        %464 = vmatprep.subr.bf16.mxu0 0
        %465 = vmatpush1.bf16.msra.mxu0 0
        %466 = vmatprep.subr.bf16.mxu0 0
        %467 = vmatpush1.bf16.msra.mxu0 0
        %468 = vmatprep.subr.bf16.mxu0 0
        %469 = vmatpush1.bf16.msra.mxu0 0
        %470 = vmatprep.subr.bf16.mxu0 0
        %471 = vmatpush1.bf16.msra.mxu0 0
        %472 = vmatprep.subr.bf16.mxu0 0
        %473 = vmatpush1.bf16.msra.mxu0 0
        %474 = vmatprep.mubr.bf16.mxu0 0
        %475 = vmatmul.mubr.bf16.gmra.mrb[0].mxu0 %v437
        %v476 = vpop.f32.mrb[0].mxu0
        %v477 = vadd.f32 0.0, %v476
        %v478 = vpop.f32.mrb[0].mxu0
        %v479 = vadd.f32 0.0, %v478
        %v480 = vpop.f32.mrb[0].mxu0
        %v481 = vadd.f32 0.0, %v480
        %v482 = vpop.f32.mrb[0].mxu0
        %v483 = vadd.f32 0.0, %v482
        %484 = vmatprep.mubr.bf16.mxu0 0
        %485 = vmatmul.mubr.bf16.gmra.mrb[0].mxu0 %v440
        %v486 = vpop.f32.mrb[0].mxu0
        %v487 = vadd.f32 0.0, %v486
        %v488 = vpop.f32.mrb[0].mxu0
        %v489 = vadd.f32 0.0, %v488
        %v490 = vpop.f32.mrb[0].mxu0
        %v491 = vadd.f32 0.0, %v490
        %v492 = vpop.f32.mrb[0].mxu0
        %v493 = vadd.f32 0.0, %v492
        %494 = vdwg.mxu0
        %v499 = vunpack.c.l.b16 %v397
        %v500 = vunpack.c.l.b16 %v398
        %v501 = vunpack.c.l.b16 %v399
        %v502 = vunpack.c.l.b16 %v400
        %v503 = vpack.c.b16 %v500, %v499
        %v504 = vpack.c.b16 %v502, %v501
        %v509 = vunpack.c.l.b16 %v389
        %v510 = vunpack.c.h.b16 %v389
        %v511 = vunpack.c.l.b16 %v390
        %v512 = vunpack.c.h.b16 %v390
        %v513 = vunpack.c.l.b16 %v391
        %v514 = vunpack.c.h.b16 %v391
        %v515 = vunpack.c.l.b16 %v392
        %v516 = vunpack.c.h.b16 %v392
        %v517 = vpack.c.b16 %v511, %v509
        %v518 = vpack.c.b16 %v512, %v510
        %v519 = vpack.c.b16 %v515, %v513
        %v520 = vpack.c.b16 %v516, %v514
        %v526 = vsel %vm435, %v503, 0
        %v529 = vsel %vm435, %v504, 0
        %531 = vmatprep.subr.bf16.mxu0 %v518
        %532 = vmatpush1.bf16.msra.mxu0 %v517
        %533 = vmatprep.subr.bf16.mxu0 %v520
        %534 = vmatpush1.bf16.msra.mxu0 %v519
        %535 = vmatprep.subr.bf16.mxu0 0
        %536 = vmatpush1.bf16.msra.mxu0 0
        %537 = vmatprep.subr.bf16.mxu0 0
        %538 = vmatpush1.bf16.msra.mxu0 0
        %539 = vmatprep.subr.bf16.mxu0 0
        %540 = vmatpush1.bf16.msra.mxu0 0
        %541 = vmatprep.subr.bf16.mxu0 0
        %542 = vmatpush1.bf16.msra.mxu0 0
        %543 = vmatprep.subr.bf16.mxu0 0
        %544 = vmatpush1.bf16.msra.mxu0 0
        %545 = vmatprep.subr.bf16.mxu0 0
        %546 = vmatpush1.bf16.msra.mxu0 0
        %547 = vmatprep.subr.bf16.mxu0 0
        %548 = vmatpush1.bf16.msra.mxu0 0
        %549 = vmatprep.subr.bf16.mxu0 0
        %550 = vmatpush1.bf16.msra.mxu0 0
        %551 = vmatprep.subr.bf16.mxu0 0
        %552 = vmatpush1.bf16.msra.mxu0 0
        %553 = vmatprep.subr.bf16.mxu0 0
        %554 = vmatpush1.bf16.msra.mxu0 0
        %555 = vmatprep.subr.bf16.mxu0 0
        %556 = vmatpush1.bf16.msra.mxu0 0
        %557 = vmatprep.subr.bf16.mxu0 0
        %558 = vmatpush1.bf16.msra.mxu0 0
        %559 = vmatprep.subr.bf16.mxu0 0
        %560 = vmatpush1.bf16.msra.mxu0 0
        %561 = vmatprep.subr.bf16.mxu0 0
        %562 = vmatpush1.bf16.msra.mxu0 0
        %563 = vmatprep.mubr.bf16.mxu0 0
        %564 = vmatmul.mubr.bf16.gmra.mrb[0].mxu0 %v526
        %v565 = vpop.f32.mrb[0].mxu0
        %v566 = vadd.f32 %v477, %v565
        %v567 = vpop.f32.mrb[0].mxu0
        %v568 = vadd.f32 %v479, %v567
        %v569 = vpop.f32.mrb[0].mxu0
        %v570 = vadd.f32 %v481, %v569
        %v571 = vpop.f32.mrb[0].mxu0
        %v572 = vadd.f32 %v483, %v571
        %573 = vmatprep.mubr.bf16.mxu0 0
        %574 = vmatmul.mubr.bf16.gmra.mrb[0].mxu0 %v529
        %v575 = vpop.f32.mrb[0].mxu0
        %v576 = vadd.f32 %v487, %v575
        %v577 = vpop.f32.mrb[0].mxu0
        %v578 = vadd.f32 %v489, %v577
        %v579 = vpop.f32.mrb[0].mxu0
        %v580 = vadd.f32 %v491, %v579
        %v581 = vpop.f32.mrb[0].mxu0
        %v582 = vadd.f32 %v493, %v581
        %583 = vdwg.mxu0
        %v584 = vld [vmem:[%s4] sm:$0xff]
        %v585 = vld [vmem:[%s4 + $0x8] sm:$0xff]
        %v586 = vld [vmem:[%s4 + $0x10] sm:$0xff]
        %v587 = vld [vmem:[%s4 + $0x18] sm:$0xff]
        %589 = vset.pattern.permute.xlu0 0
        %590 = vperm.xlu0 %589, %v584
        %v591 = vpop.permute.xlu0 %590
        %594 = vset.pattern.permute.xlu0 0
        %595 = vperm.xlu0 %594, %v585
        %v596 = vpop.permute.xlu0 %595
        %599 = vset.pattern.permute.xlu0 0
        %600 = vperm.xlu0 %599, %v586
        %v601 = vpop.permute.xlu0 %600
        %604 = vset.pattern.permute.xlu0 0
        %605 = vperm.xlu0 %604, %v587
        %v606 = vpop.permute.xlu0 %605
        %v608 = vadd.f32 %v566, %v591
        %v609 = vadd.f32 %v568, %v591
        %v610 = vadd.f32 %v570, %v596
        %v611 = vadd.f32 %v572, %v596
        %v612 = vadd.f32 %v576, %v601
        %v613 = vadd.f32 %v578, %v601
        %v614 = vadd.f32 %v580, %v606
        %v615 = vadd.f32 %v582, %v606
        %v616 = vmax.f32 %v608, 0.0
        %v617 = vmax.f32 %v609, 0.0
        %v618 = vmax.f32 %v610, 0.0
        %v619 = vmax.f32 %v611, 0.0
        %v620 = vmax.f32 %v612, 0.0
        %v621 = vmax.f32 %v613, 0.0
        %v622 = vmax.f32 %v614, 0.0
        %v623 = vmax.f32 %v615, 0.0
        %v624 = vadd.f32 %v616, %v617
        %625 = vadd.xlane.f32.xlu0 %v624
        %v626 = vpop.xlane.xlu0 %625
        %v627 = vadd.f32 %v618, %v619
        %628 = vadd.xlane.f32.xlu0 %v627
        %v629 = vpop.xlane.xlu0 %628
        %v630 = vadd.f32 %v620, %v621
        %631 = vadd.xlane.f32.xlu0 %v630
        %v632 = vpop.xlane.xlu0 %631
        %v633 = vadd.f32 %v622, %v623
        %634 = vadd.xlane.f32.xlu0 %v633
        %v635 = vpop.xlane.xlu0 %634
        %v636 = vrcp.pop 256.0
        %v637 = vmul.f32 %v626, %v636
        %v638 = vmul.f32 %v629, %v636
        %v639 = vmul.f32 %v632, %v636
        %v640 = vmul.f32 %v635, %v636
        %v641 = vmax.f32 %v616, %v617
        %642 = vmax.xlane.f32.xlu0 %v641
        %v643 = vpop.xlane.xlu0 %642
        %v644 = vmax.f32 %v618, %v619
        %645 = vmax.xlane.f32.xlu0 %v644
        %v646 = vpop.xlane.xlu0 %645
        %v647 = vmax.f32 %v620, %v621
        %648 = vmax.xlane.f32.xlu0 %v647
        %v649 = vpop.xlane.xlu0 %648
        %v650 = vmax.f32 %v622, %v623
        %651 = vmax.xlane.f32.xlu0 %v650
        %v652 = vpop.xlane.xlu0 %651
        %v653 = vlaneseq
        %v654 = vand.u32 %v653, 127
        %vm655 = vcmp.eq.s32.totalorder %v654, 0
        %v656 = vsel %vm655, %v637, %v643
        %v657 = vsel %vm655, %v638, %v646
        %v658 = vsel %vm655, %v639, %v649
        %v659 = vsel %vm655, %v640, %v652
        %v660 = vld [vmem:[%s5] sm:$0x3]
        %v662 = vsel %vm435, %v660, 0
        %664 = vmatprep.subr.mxu0 0.0
        %665 = vmatpush1.msra.mxu0 %v656
        %666 = vmatprep.subr.mxu0 0.0
        %667 = vmatpush1.msra.mxu0 %v657
        %668 = vmatprep.subr.mxu0 0.0
        %669 = vmatpush1.msra.mxu0 %v658
        %670 = vmatprep.subr.mxu0 0.0
        %671 = vmatpush1.msra.mxu0 %v659
        %672 = vmatprep.subr.mxu0 0.0
        %673 = vmatpush1.msra.mxu0 0.0
        %674 = vmatprep.subr.mxu0 0.0
        %675 = vmatpush1.msra.mxu0 0.0
        %676 = vmatprep.subr.mxu0 0.0
        %677 = vmatpush1.msra.mxu0 0.0
        %678 = vmatprep.subr.mxu0 0.0
        %679 = vmatpush1.msra.mxu0 0.0
        %680 = vmatprep.subr.mxu0 0.0
        %681 = vmatpush1.msra.mxu0 0.0
        %682 = vmatprep.subr.mxu0 0.0
        %683 = vmatpush1.msra.mxu0 0.0
        %684 = vmatprep.subr.mxu0 0.0
        %685 = vmatpush1.msra.mxu0 0.0
        %686 = vmatprep.subr.mxu0 0.0
        %687 = vmatpush1.msra.mxu0 0.0
        %688 = vmatprep.subr.mxu0 0.0
        %689 = vmatpush1.msra.mxu0 0.0
        %690 = vmatprep.subr.mxu0 0.0
        %691 = vmatpush1.msra.mxu0 0.0
        %692 = vmatprep.subr.mxu0 0.0
        %693 = vmatpush1.msra.mxu0 0.0
        %694 = vmatprep.subr.mxu0 0.0
        %695 = vmatpush1.msra.mxu0 0.0
        %696 = vmatprep.subr.mxu0 0.0
        %697 = vmatpush1.msra.mxu0 0.0
        %698 = vmatprep.subr.mxu0 0.0
        %699 = vmatpush1.msra.mxu0 0.0
        %700 = vmatprep.subr.mxu0 0.0
        %701 = vmatpush1.msra.mxu0 0.0
        %702 = vmatprep.subr.mxu0 0.0
        %703 = vmatpush1.msra.mxu0 0.0
        %704 = vmatprep.subr.mxu0 0.0
        %705 = vmatpush1.msra.mxu0 0.0
        %706 = vmatprep.subr.mxu0 0.0
        %707 = vmatpush1.msra.mxu0 0.0
        %708 = vmatprep.subr.mxu0 0.0
        %709 = vmatpush1.msra.mxu0 0.0
        %710 = vmatprep.subr.mxu0 0.0
        %711 = vmatpush1.msra.mxu0 0.0
        %712 = vmatprep.subr.mxu0 0.0
        %713 = vmatpush1.msra.mxu0 0.0
        %714 = vmatprep.subr.mxu0 0.0
        %715 = vmatpush1.msra.mxu0 0.0
        %716 = vmatprep.subr.mxu0 0.0
        %717 = vmatpush1.msra.mxu0 0.0
        %718 = vmatprep.subr.mxu0 0.0
        %719 = vmatpush1.msra.mxu0 0.0
        %720 = vmatprep.subr.mxu0 0.0
        %721 = vmatpush1.msra.mxu0 0.0
        %722 = vmatprep.subr.mxu0 0.0
        %723 = vmatpush1.msra.mxu0 0.0
        %724 = vmatprep.subr.mxu0 0.0
        %725 = vmatpush1.msra.mxu0 0.0
        %726 = vmatprep.subr.mxu0 0.0
        %727 = vmatpush1.msra.mxu0 0.0
        %728 = vmatprep.mubr.f32.mxu0 0.0
        %729 = vmatmul.mubr.f32.gmra.mrb[0].mxu0 %v662
        %v730 = vpop.f32.mrb[0].mxu0
        %v731 = vadd.f32 0.0, %v730
        %v732 = vpop.f32.mrb[0].mxu0
        %733 = vdwg.mxu0
        %v734 = vmax.f32 %v731, 0.0
        %v735 = vld [vmem:[%s6] sm:$0xff]
        %v736 = vld [vmem:[%s6 + $0x8] sm:$0xff]
        %v737 = vld [vmem:[%s6 + $0x10] sm:$0xff]
        %v738 = vld [vmem:[%s6 + $0x18] sm:$0xff]
        %vm739 = vcmask 15360
        %v741 = vsel %vm739, %v735, 0
        %v744 = vsel %vm739, %v736, 0
        %v747 = vsel %vm739, %v737, 0
        %v750 = vsel %vm739, %v738, 0
        %vm752 = vcmask 1041408
        %v754 = vsel %vm752, %v734, 0
        %756 = vmatprep.subr.mxu0 0.0
        %757 = vmatpush1.msra.mxu0 %v754
        %758 = vmatprep.subr.mxu0 0.0
        %759 = vmatpush1.msra.mxu0 0.0
        %760 = vmatprep.subr.mxu0 0.0
        %761 = vmatpush1.msra.mxu0 0.0
        %762 = vmatprep.subr.mxu0 0.0
        %763 = vmatpush1.msra.mxu0 0.0
        %764 = vmatprep.subr.mxu0 0.0
        %765 = vmatpush1.msra.mxu0 0.0
        %766 = vmatprep.subr.mxu0 0.0
        %767 = vmatpush1.msra.mxu0 0.0
        %768 = vmatprep.subr.mxu0 0.0
        %769 = vmatpush1.msra.mxu0 0.0
        %770 = vmatprep.subr.mxu0 0.0
        %771 = vmatpush1.msra.mxu0 0.0
        %772 = vmatprep.subr.mxu0 0.0
        %773 = vmatpush1.msra.mxu0 0.0
        %774 = vmatprep.subr.mxu0 0.0
        %775 = vmatpush1.msra.mxu0 0.0
        %776 = vmatprep.subr.mxu0 0.0
        %777 = vmatpush1.msra.mxu0 0.0
        %778 = vmatprep.subr.mxu0 0.0
        %779 = vmatpush1.msra.mxu0 0.0
        %780 = vmatprep.subr.mxu0 0.0
        %781 = vmatpush1.msra.mxu0 0.0
        %782 = vmatprep.subr.mxu0 0.0
        %783 = vmatpush1.msra.mxu0 0.0
        %784 = vmatprep.subr.mxu0 0.0
        %785 = vmatpush1.msra.mxu0 0.0
        %786 = vmatprep.subr.mxu0 0.0
        %787 = vmatpush1.msra.mxu0 0.0
        %788 = vmatprep.subr.mxu0 0.0
        %789 = vmatpush1.msra.mxu0 0.0
        %790 = vmatprep.subr.mxu0 0.0
        %791 = vmatpush1.msra.mxu0 0.0
        %792 = vmatprep.subr.mxu0 0.0
        %793 = vmatpush1.msra.mxu0 0.0
        %794 = vmatprep.subr.mxu0 0.0
        %795 = vmatpush1.msra.mxu0 0.0
        %796 = vmatprep.subr.mxu0 0.0
        %797 = vmatpush1.msra.mxu0 0.0
        %798 = vmatprep.subr.mxu0 0.0
        %799 = vmatpush1.msra.mxu0 0.0
        %800 = vmatprep.subr.mxu0 0.0
        %801 = vmatpush1.msra.mxu0 0.0
        %802 = vmatprep.subr.mxu0 0.0
        %803 = vmatpush1.msra.mxu0 0.0
        %804 = vmatprep.subr.mxu0 0.0
        %805 = vmatpush1.msra.mxu0 0.0
        %806 = vmatprep.subr.mxu0 0.0
        %807 = vmatpush1.msra.mxu0 0.0
        %808 = vmatprep.subr.mxu0 0.0
        %809 = vmatpush1.msra.mxu0 0.0
        %810 = vmatprep.subr.mxu0 0.0
        %811 = vmatpush1.msra.mxu0 0.0
        %812 = vmatprep.subr.mxu0 0.0
        %813 = vmatpush1.msra.mxu0 0.0
        %814 = vmatprep.subr.mxu0 0.0
        %815 = vmatpush1.msra.mxu0 0.0
        %816 = vmatprep.subr.mxu0 0.0
        %817 = vmatpush1.msra.mxu0 0.0
        %818 = vmatprep.subr.mxu0 0.0
        %819 = vmatpush1.msra.mxu0 0.0
        %820 = vmatprep.mubr.f32.mxu0 0.0
        %821 = vmatmul.mubr.f32.gmra.mrb[0].mxu0 %v741
        %v822 = vpop.f32.mrb[0].mxu0
        %v823 = vadd.f32 0.0, %v822
        %v824 = vpop.f32.mrb[0].mxu0
        %825 = vmatprep.mubr.f32.mxu0 0.0
        %826 = vmatmul.mubr.f32.gmra.mrb[0].mxu0 %v744
        %v827 = vpop.f32.mrb[0].mxu0
        %v828 = vadd.f32 0.0, %v827
        %v829 = vpop.f32.mrb[0].mxu0
        %830 = vmatprep.mubr.f32.mxu0 0.0
        %831 = vmatmul.mubr.f32.gmra.mrb[0].mxu0 %v747
        %v832 = vpop.f32.mrb[0].mxu0
        %v833 = vadd.f32 0.0, %v832
        %v834 = vpop.f32.mrb[0].mxu0
        %835 = vmatprep.mubr.f32.mxu0 0.0
        %836 = vmatmul.mubr.f32.gmra.mrb[0].mxu0 %v750
        %v837 = vpop.f32.mrb[0].mxu0
        %v838 = vadd.f32 0.0, %v837
        %v839 = vpop.f32.mrb[0].mxu0
        %840 = vdwg.mxu0
        %v841 = vsel %vm739, %v823, 0.0
        %842 = vadd.xlane.f32.xlu0 %v841
        %v843 = vpop.xlane.xlu0 %842
        %v844 = vsel %vm739, %v828, 0.0
        %845 = vadd.xlane.f32.xlu0 %v844
        %v846 = vpop.xlane.xlu0 %845
        %v847 = vsel %vm739, %v833, 0.0
        %848 = vadd.xlane.f32.xlu0 %v847
        %v849 = vpop.xlane.xlu0 %848
        %v850 = vsel %vm739, %v838, 0.0
        %851 = vadd.xlane.f32.xlu0 %v850
        %v852 = vpop.xlane.xlu0 %851
        %v853 = vxor.u32 %v843, 2147483648
        %v854 = vxor.u32 %v846, 2147483648
        %v855 = vxor.u32 %v849, 2147483648
        %v856 = vxor.u32 %v852, 2147483648
        %v857 = vmul.f32 %v853, 1.442695
        %v858 = vpow.pop %v857
        %v859 = vmul.f32 %v854, 1.442695
        %v860 = vpow.pop %v859
        %v861 = vmul.f32 %v855, 1.442695
        %v862 = vpow.pop %v861
        %v863 = vmul.f32 %v856, 1.442695
        %v864 = vpow.pop %v863
        %v865 = vadd.f32 %v858, 1.0
        %v866 = vadd.f32 %v860, 1.0
        %v867 = vadd.f32 %v862, 1.0
        %v868 = vadd.f32 %v864, 1.0
        %v869 = vrcp.pop %v865
        %v870 = vmul.f32 1.0, %v869
        %v871 = vrcp.pop %v866
        %v872 = vmul.f32 1.0, %v871
        %v873 = vrcp.pop %v867
        %v874 = vmul.f32 1.0, %v873
        %v875 = vrcp.pop %v868
        %v876 = vmul.f32 1.0, %v875
        %v877 = vmul.f32 %v616, %v870
        %v878 = vmul.f32 %v617, %v870
        %v879 = vmul.f32 %v618, %v872
        %v880 = vmul.f32 %v619, %v872
        %v881 = vmul.f32 %v620, %v874
        %v882 = vmul.f32 %v621, %v874
        %v883 = vmul.f32 %v622, %v876
        %v884 = vmul.f32 %v623, %v876
        %v885 = vadd.f32 %v877, %v879
        %v886 = vadd.f32 %v885, %v881
        %v887 = vadd.f32 %v886, %v883
        %v888 = vrot.slane %v887, 4
        %v889 = vadd.f32 %v887, %v888
        %v890 = vrot.slane %v889, 2
        %v891 = vadd.f32 %v889, %v890
        %v892 = vrot.slane %v891, 1
        %v893 = vadd.f32 %v891, %v892
        %v894 = vadd.f32 %v878, %v880
        %v895 = vadd.f32 %v894, %v882
        %v896 = vadd.f32 %v895, %v884
        %v897 = vrot.slane %v896, 4
        %v898 = vadd.f32 %v896, %v897
        %v899 = vrot.slane %v898, 2
        %v900 = vadd.f32 %v898, %v899
        %v901 = vrot.slane %v900, 1
        %v902 = vadd.f32 %v900, %v901
        %v903 = vrcp.pop 32.0
        %v904 = vmul.f32 %v893, %v903
        %v905 = vmul.f32 %v902, %v903
        %v906 = vmax.f32 %v877, %v881
        %v907 = vmax.f32 %v879, %v883
        %v908 = vmax.f32 %v906, %v907
        %v909 = vrot.slane %v908, 4
        %v910 = vmax.f32 %v908, %v909
        %v911 = vrot.slane %v910, 2
        %v912 = vmax.f32 %v910, %v911
        %v913 = vrot.slane %v912, 1
        %v914 = vmax.f32 %v912, %v913
        %v915 = vmax.f32 %v878, %v882
        %v916 = vmax.f32 %v880, %v884
        %v917 = vmax.f32 %v915, %v916
        %v918 = vrot.slane %v917, 4
        %v919 = vmax.f32 %v917, %v918
        %v920 = vrot.slane %v919, 2
        %v921 = vmax.f32 %v919, %v920
        %v922 = vrot.slane %v921, 1
        %v923 = vmax.f32 %v921, %v922
        %v924 = vld [vmem:[#allocation8] sm:$0xff]
        %v925 = vld [vmem:[#allocation8 + $0x8] sm:$0xff]
        %v926 = vld [vmem:[#allocation8 + $0x10] sm:$0xff]
        %v927 = vld [vmem:[#allocation8 + $0x18] sm:$0xff]
        %v928 = vld [vmem:[#allocation8 + $0x20] sm:$0xff]
        %v929 = vld [vmem:[#allocation8 + $0x28] sm:$0xff]
        %v930 = vld [vmem:[#allocation8 + $0x30] sm:$0xff]
        %v931 = vld [vmem:[#allocation8 + $0x38] sm:$0xff]
        %v932 = vld [vmem:[#allocation8 + $0x40] sm:$0xff]
        %v933 = vld [vmem:[#allocation8 + $0x48] sm:$0xff]
        %v934 = vld [vmem:[#allocation8 + $0x50] sm:$0xff]
        %v935 = vld [vmem:[#allocation8 + $0x58] sm:$0xff]
        %v936 = vld [vmem:[#allocation8 + $0x60] sm:$0xff]
        %v937 = vld [vmem:[#allocation8 + $0x68] sm:$0xff]
        %v938 = vld [vmem:[#allocation8 + $0x70] sm:$0xff]
        %v939 = vld [vmem:[#allocation8 + $0x78] sm:$0xff]
        %v940 = vld [vmem:[#allocation8 + $0x80] sm:$0xff]
        %v941 = vld [vmem:[#allocation8 + $0x88] sm:$0xff]
        %v942 = vld [vmem:[#allocation8 + $0x90] sm:$0xff]
        %v943 = vld [vmem:[#allocation8 + $0x98] sm:$0xff]
        %v944 = vld [vmem:[#allocation8 + $0xa0] sm:$0xff]
        %v945 = vld [vmem:[#allocation8 + $0xa8] sm:$0xff]
        %v946 = vld [vmem:[#allocation8 + $0xb0] sm:$0xff]
        %v947 = vld [vmem:[#allocation8 + $0xb8] sm:$0xff]
        %v948 = vld [vmem:[#allocation8 + $0xc0] sm:$0xff]
        %v949 = vld [vmem:[#allocation8 + $0xc8] sm:$0xff]
        %v950 = vld [vmem:[#allocation8 + $0xd0] sm:$0xff]
        %v951 = vld [vmem:[#allocation8 + $0xd8] sm:$0xff]
        %v952 = vld [vmem:[#allocation8 + $0xe0] sm:$0xff]
        %v953 = vld [vmem:[#allocation8 + $0xe8] sm:$0xff]
        %v954 = vld [vmem:[#allocation8 + $0xf0] sm:$0xff]
        %v955 = vld [vmem:[#allocation8 + $0xf8] sm:$0xff]
        %v956 = vld [vmem:[#allocation8 + $0x100] sm:$0xff]
        %v957 = vld [vmem:[#allocation8 + $0x108] sm:$0xff]
        %v958 = vld [vmem:[#allocation8 + $0x110] sm:$0xff]
        %v959 = vld [vmem:[#allocation8 + $0x118] sm:$0xff]
        %v960 = vld [vmem:[#allocation8 + $0x120] sm:$0xff]
        %v961 = vld [vmem:[#allocation8 + $0x128] sm:$0xff]
        %v962 = vld [vmem:[#allocation8 + $0x130] sm:$0xff]
        %v963 = vld [vmem:[#allocation8 + $0x138] sm:$0xff]
        %v964 = vld [vmem:[#allocation8 + $0x140] sm:$0xff]
        %v965 = vld [vmem:[#allocation8 + $0x148] sm:$0xff]
        %v966 = vld [vmem:[#allocation8 + $0x150] sm:$0xff]
        %v967 = vld [vmem:[#allocation8 + $0x158] sm:$0xff]
        %v968 = vld [vmem:[#allocation8 + $0x160] sm:$0xff]
        %v969 = vld [vmem:[#allocation8 + $0x168] sm:$0xff]
        %v970 = vld [vmem:[#allocation8 + $0x170] sm:$0xff]
        %v971 = vld [vmem:[#allocation8 + $0x178] sm:$0xff]
        %v972 = vld [vmem:[#allocation8 + $0x180] sm:$0xff]
        %v973 = vld [vmem:[#allocation8 + $0x188] sm:$0xff]
        %v974 = vld [vmem:[#allocation8 + $0x190] sm:$0xff]
        %v975 = vld [vmem:[#allocation8 + $0x198] sm:$0xff]
        %v976 = vld [vmem:[#allocation8 + $0x1a0] sm:$0xff]
        %v977 = vld [vmem:[#allocation8 + $0x1a8] sm:$0xff]
        %v978 = vld [vmem:[#allocation8 + $0x1b0] sm:$0xff]
        %v979 = vld [vmem:[#allocation8 + $0x1b8] sm:$0xff]
        %v980 = vld [vmem:[#allocation8 + $0x1c0] sm:$0xff]
        %v981 = vld [vmem:[#allocation8 + $0x1c8] sm:$0xff]
        %v982 = vld [vmem:[#allocation8 + $0x1d0] sm:$0xff]
        %v983 = vld [vmem:[#allocation8 + $0x1d8] sm:$0xff]
        %v984 = vld [vmem:[#allocation8 + $0x1e0] sm:$0xff]
        %v985 = vld [vmem:[#allocation8 + $0x1e8] sm:$0xff]
        %v986 = vld [vmem:[#allocation8 + $0x1f0] sm:$0xff]
        %v987 = vld [vmem:[#allocation8 + $0x1f8] sm:$0xff]
        %v988 = vld [vmem:[#allocation8 + $0x200] sm:$0xff]
        %v989 = vld [vmem:[#allocation8 + $0x208] sm:$0xff]
        %v990 = vld [vmem:[#allocation8 + $0x210] sm:$0xff]
        %v991 = vld [vmem:[#allocation8 + $0x218] sm:$0xff]
        %v992 = vld [vmem:[#allocation8 + $0x220] sm:$0xff]
        %v993 = vld [vmem:[#allocation8 + $0x228] sm:$0xff]
        %v994 = vld [vmem:[#allocation8 + $0x230] sm:$0xff]
        %v995 = vld [vmem:[#allocation8 + $0x238] sm:$0xff]
        %v996 = vld [vmem:[#allocation8 + $0x240] sm:$0xff]
        %v997 = vld [vmem:[#allocation8 + $0x248] sm:$0xff]
        %v998 = vld [vmem:[#allocation8 + $0x250] sm:$0xff]
        %v999 = vld [vmem:[#allocation8 + $0x258] sm:$0xff]
        %v1000 = vld [vmem:[#allocation8 + $0x260] sm:$0xff]
        %v1001 = vld [vmem:[#allocation8 + $0x268] sm:$0xff]
        %v1002 = vld [vmem:[#allocation8 + $0x270] sm:$0xff]
        %v1003 = vld [vmem:[#allocation8 + $0x278] sm:$0xff]
        %v1004 = vld [vmem:[#allocation8 + $0x280] sm:$0xff]
        %v1005 = vld [vmem:[#allocation8 + $0x288] sm:$0xff]
        %v1006 = vld [vmem:[#allocation8 + $0x290] sm:$0xff]
        %v1007 = vld [vmem:[#allocation8 + $0x298] sm:$0xff]
        %v1008 = vld [vmem:[#allocation8 + $0x2a0] sm:$0xff]
        %v1009 = vld [vmem:[#allocation8 + $0x2a8] sm:$0xff]
        %v1010 = vld [vmem:[#allocation8 + $0x2b0] sm:$0xff]
        %v1011 = vld [vmem:[#allocation8 + $0x2b8] sm:$0xff]
        %v1012 = vld [vmem:[#allocation8 + $0x2c0] sm:$0xff]
        %v1013 = vld [vmem:[#allocation8 + $0x2c8] sm:$0xff]
        %v1014 = vld [vmem:[#allocation8 + $0x2d0] sm:$0xff]
        %v1015 = vld [vmem:[#allocation8 + $0x2d8] sm:$0xff]
        %v1016 = vld [vmem:[#allocation8 + $0x2e0] sm:$0xff]
        %v1017 = vld [vmem:[#allocation8 + $0x2e8] sm:$0xff]
        %v1018 = vld [vmem:[#allocation8 + $0x2f0] sm:$0xff]
        %v1019 = vld [vmem:[#allocation8 + $0x2f8] sm:$0xff]
        %v1020 = vld [vmem:[#allocation8 + $0x300] sm:$0xff]
        %v1021 = vld [vmem:[#allocation8 + $0x308] sm:$0xff]
        %v1022 = vld [vmem:[#allocation8 + $0x310] sm:$0xff]
        %v1023 = vld [vmem:[#allocation8 + $0x318] sm:$0xff]
        %v1024 = vld [vmem:[#allocation8 + $0x320] sm:$0xff]
        %v1025 = vld [vmem:[#allocation8 + $0x328] sm:$0xff]
        %v1026 = vld [vmem:[#allocation8 + $0x330] sm:$0xff]
        %v1027 = vld [vmem:[#allocation8 + $0x338] sm:$0xff]
        %v1028 = vld [vmem:[#allocation8 + $0x340] sm:$0xff]
        %v1029 = vld [vmem:[#allocation8 + $0x348] sm:$0xff]
        %v1030 = vld [vmem:[#allocation8 + $0x350] sm:$0xff]
        %v1031 = vld [vmem:[#allocation8 + $0x358] sm:$0xff]
        %v1032 = vld [vmem:[#allocation8 + $0x360] sm:$0xff]
        %v1033 = vld [vmem:[#allocation8 + $0x368] sm:$0xff]
        %v1034 = vld [vmem:[#allocation8 + $0x370] sm:$0xff]
        %v1035 = vld [vmem:[#allocation8 + $0x378] sm:$0xff]
        %v1036 = vld [vmem:[#allocation8 + $0x380] sm:$0xff]
        %v1037 = vld [vmem:[#allocation8 + $0x388] sm:$0xff]
        %v1038 = vld [vmem:[#allocation8 + $0x390] sm:$0xff]
        %v1039 = vld [vmem:[#allocation8 + $0x398] sm:$0xff]
        %v1040 = vld [vmem:[#allocation8 + $0x3a0] sm:$0xff]
        %v1041 = vld [vmem:[#allocation8 + $0x3a8] sm:$0xff]
        %v1042 = vld [vmem:[#allocation8 + $0x3b0] sm:$0xff]
        %v1043 = vld [vmem:[#allocation8 + $0x3b8] sm:$0xff]
        %v1044 = vld [vmem:[#allocation8 + $0x3c0] sm:$0xff]
        %v1045 = vld [vmem:[#allocation8 + $0x3c8] sm:$0xff]
        %v1046 = vld [vmem:[#allocation8 + $0x3d0] sm:$0xff]
        %v1047 = vld [vmem:[#allocation8 + $0x3d8] sm:$0xff]
        %v1048 = vld [vmem:[#allocation8 + $0x3e0] sm:$0xff]
        %v1049 = vld [vmem:[#allocation8 + $0x3e8] sm:$0xff]
        %v1050 = vld [vmem:[#allocation8 + $0x3f0] sm:$0xff]
        %v1051 = vld [vmem:[#allocation8 + $0x3f8] sm:$0xff]
        %1052 = vmatprep.subr.mxu0 %v925
        %1053 = vmatpush1.msra.mxu0 %v924
        %1054 = vmatprep.subr.mxu0 %v927
        %1055 = vmatpush1.msra.mxu0 %v926
        %1056 = vmatprep.subr.mxu0 %v929
        %1057 = vmatpush1.msra.mxu0 %v928
        %1058 = vmatprep.subr.mxu0 %v931
        %1059 = vmatpush1.msra.mxu0 %v930
        %1060 = vmatprep.subr.mxu0 %v933
        %1061 = vmatpush1.msra.mxu0 %v932
        %1062 = vmatprep.subr.mxu0 %v935
        %1063 = vmatpush1.msra.mxu0 %v934
        %1064 = vmatprep.subr.mxu0 %v937
        %1065 = vmatpush1.msra.mxu0 %v936
        %1066 = vmatprep.subr.mxu0 %v939
        %1067 = vmatpush1.msra.mxu0 %v938
        %1068 = vmatprep.subr.mxu0 %v941
        %1069 = vmatpush1.msra.mxu0 %v940
        %1070 = vmatprep.subr.mxu0 %v943
        %1071 = vmatpush1.msra.mxu0 %v942
        %1072 = vmatprep.subr.mxu0 %v945
        %1073 = vmatpush1.msra.mxu0 %v944
        %1074 = vmatprep.subr.mxu0 %v947
        %1075 = vmatpush1.msra.mxu0 %v946
        %1076 = vmatprep.subr.mxu0 %v949
        %1077 = vmatpush1.msra.mxu0 %v948
        %1078 = vmatprep.subr.mxu0 %v951
        %1079 = vmatpush1.msra.mxu0 %v950
        %1080 = vmatprep.subr.mxu0 %v953
        %1081 = vmatpush1.msra.mxu0 %v952
        %1082 = vmatprep.subr.mxu0 %v955
        %1083 = vmatpush1.msra.mxu0 %v954
        %1084 = vmatprep.subr.mxu0 %v957
        %1085 = vmatpush1.msra.mxu0 %v956
        %1086 = vmatprep.subr.mxu0 %v959
        %1087 = vmatpush1.msra.mxu0 %v958
        %1088 = vmatprep.subr.mxu0 %v961
        %1089 = vmatpush1.msra.mxu0 %v960
        %1090 = vmatprep.subr.mxu0 %v963
        %1091 = vmatpush1.msra.mxu0 %v962
        %1092 = vmatprep.subr.mxu0 %v965
        %1093 = vmatpush1.msra.mxu0 %v964
        %1094 = vmatprep.subr.mxu0 %v967
        %1095 = vmatpush1.msra.mxu0 %v966
        %1096 = vmatprep.subr.mxu0 %v969
        %1097 = vmatpush1.msra.mxu0 %v968
        %1098 = vmatprep.subr.mxu0 %v971
        %1099 = vmatpush1.msra.mxu0 %v970
        %1100 = vmatprep.subr.mxu0 %v973
        %1101 = vmatpush1.msra.mxu0 %v972
        %1102 = vmatprep.subr.mxu0 %v975
        %1103 = vmatpush1.msra.mxu0 %v974
        %1104 = vmatprep.subr.mxu0 %v977
        %1105 = vmatpush1.msra.mxu0 %v976
        %1106 = vmatprep.subr.mxu0 %v979
        %1107 = vmatpush1.msra.mxu0 %v978
        %1108 = vmatprep.subr.mxu0 %v981
        %1109 = vmatpush1.msra.mxu0 %v980
        %1110 = vmatprep.subr.mxu0 %v983
        %1111 = vmatpush1.msra.mxu0 %v982
        %1112 = vmatprep.subr.mxu0 %v985
        %1113 = vmatpush1.msra.mxu0 %v984
        %1114 = vmatprep.subr.mxu0 %v987
        %1115 = vmatpush1.msra.mxu0 %v986
        %1116 = vmatprep.mubr.f32.mxu0 %v905
        %1117 = vmatmul.mubr.f32.gmra.mrb[0].mxu0 %v904
        %v1118 = vpop.f32.mrb[0].mxu0
        %v1119 = vadd.f32 0.0, %v1118
        %v1120 = vpop.f32.mrb[0].mxu0
        %v1121 = vadd.f32 0.0, %v1120
        %1122 = vdwg.mxu0
        %1123 = vmatprep.subr.mxu0 %v989
        %1124 = vmatpush1.msra.mxu0 %v988
        %1125 = vmatprep.subr.mxu0 %v991
        %1126 = vmatpush1.msra.mxu0 %v990
        %1127 = vmatprep.subr.mxu0 %v993
        %1128 = vmatpush1.msra.mxu0 %v992
        %1129 = vmatprep.subr.mxu0 %v995
        %1130 = vmatpush1.msra.mxu0 %v994
        %1131 = vmatprep.subr.mxu0 %v997
        %1132 = vmatpush1.msra.mxu0 %v996
        %1133 = vmatprep.subr.mxu0 %v999
        %1134 = vmatpush1.msra.mxu0 %v998
        %1135 = vmatprep.subr.mxu0 %v1001
        %1136 = vmatpush1.msra.mxu0 %v1000
        %1137 = vmatprep.subr.mxu0 %v1003
        %1138 = vmatpush1.msra.mxu0 %v1002
        %1139 = vmatprep.subr.mxu0 %v1005
        %1140 = vmatpush1.msra.mxu0 %v1004
        %1141 = vmatprep.subr.mxu0 %v1007
        %1142 = vmatpush1.msra.mxu0 %v1006
        %1143 = vmatprep.subr.mxu0 %v1009
        %1144 = vmatpush1.msra.mxu0 %v1008
        %1145 = vmatprep.subr.mxu0 %v1011
        %1146 = vmatpush1.msra.mxu0 %v1010
        %1147 = vmatprep.subr.mxu0 %v1013
        %1148 = vmatpush1.msra.mxu0 %v1012
        %1149 = vmatprep.subr.mxu0 %v1015
        %1150 = vmatpush1.msra.mxu0 %v1014
        %1151 = vmatprep.subr.mxu0 %v1017
        %1152 = vmatpush1.msra.mxu0 %v1016
        %1153 = vmatprep.subr.mxu0 %v1019
        %1154 = vmatpush1.msra.mxu0 %v1018
        %1155 = vmatprep.subr.mxu0 %v1021
        %1156 = vmatpush1.msra.mxu0 %v1020
        %1157 = vmatprep.subr.mxu0 %v1023
        %1158 = vmatpush1.msra.mxu0 %v1022
        %1159 = vmatprep.subr.mxu0 %v1025
        %1160 = vmatpush1.msra.mxu0 %v1024
        %1161 = vmatprep.subr.mxu0 %v1027
        %1162 = vmatpush1.msra.mxu0 %v1026
        %1163 = vmatprep.subr.mxu0 %v1029
        %1164 = vmatpush1.msra.mxu0 %v1028
        %1165 = vmatprep.subr.mxu0 %v1031
        %1166 = vmatpush1.msra.mxu0 %v1030
        %1167 = vmatprep.subr.mxu0 %v1033
        %1168 = vmatpush1.msra.mxu0 %v1032
        %1169 = vmatprep.subr.mxu0 %v1035
        %1170 = vmatpush1.msra.mxu0 %v1034
        %1171 = vmatprep.subr.mxu0 %v1037
        %1172 = vmatpush1.msra.mxu0 %v1036
        %1173 = vmatprep.subr.mxu0 %v1039
        %1174 = vmatpush1.msra.mxu0 %v1038
        %1175 = vmatprep.subr.mxu0 %v1041
        %1176 = vmatpush1.msra.mxu0 %v1040
        %1177 = vmatprep.subr.mxu0 %v1043
        %1178 = vmatpush1.msra.mxu0 %v1042
        %1179 = vmatprep.subr.mxu0 %v1045
        %1180 = vmatpush1.msra.mxu0 %v1044
        %1181 = vmatprep.subr.mxu0 %v1047
        %1182 = vmatpush1.msra.mxu0 %v1046
        %1183 = vmatprep.subr.mxu0 %v1049
        %1184 = vmatpush1.msra.mxu0 %v1048
        %1185 = vmatprep.subr.mxu0 %v1051
        %1186 = vmatpush1.msra.mxu0 %v1050
        %1187 = vmatprep.mubr.f32.mxu0 %v923
        %1188 = vmatmul.mubr.f32.gmra.mrb[0].mxu0 %v914
        %v1189 = vpop.f32.mrb[0].mxu0
        %v1190 = vadd.f32 %v1119, %v1189
        %v1191 = vpop.f32.mrb[0].mxu0
        %v1192 = vadd.f32 %v1121, %v1191
        %1193 = vdwg.mxu0
        %v1194 = vxor.u32 %v1190, 2147483648
        %v1195 = vxor.u32 %v1192, 2147483648
        %v1196 = vmul.f32 %v1194, 1.442695
        %v1197 = vpow.pop %v1196
        %v1198 = vmul.f32 %v1195, 1.442695
        %v1199 = vpow.pop %v1198
        %v1200 = vadd.f32 %v1197, 1.0
        %v1201 = vadd.f32 %v1199, 1.0
        %v1202 = vrcp.pop %v1200
        %v1203 = vmul.f32 1.0, %v1202
        %v1204 = vrcp.pop %v1201
        %v1205 = vmul.f32 1.0, %v1204
        %v1206 = vlaneseq
        %v1207 = vshrl.u32 %v1206, 7
        %v1208 = vsub.s32 0, %v1207
        %v1209 = vrot.slane %v1203, %v1208
        %v1210 = vlaneseq
        %v1211 = vshrl.u32 %v1210, 7
        %v1212 = vsub.s32 0, %v1211
        %v1213 = vrot.slane %v1205, %v1212
        %v1214 = vmul.f32 %v877, %v1209
        %v1215 = vmul.f32 %v878, %v1213
        %v1216 = vmul.f32 %v879, %v1209
        %v1217 = vmul.f32 %v880, %v1213
        %v1218 = vmul.f32 %v881, %v1209
        %v1219 = vmul.f32 %v882, %v1213
        %v1220 = vmul.f32 %v883, %v1209
        %v1221 = vmul.f32 %v884, %v1213
        %1222 = vst [vmem:[%s382] sm:$0xff] %v1214
        %1223 = vst [vmem:[%s382 + $0x8] sm:$0xff] %v1215
        %1224 = vst [vmem:[%s382 + $0x10] sm:$0xff] %v1216
        %1225 = vst [vmem:[%s382 + $0x18] sm:$0xff] %v1217
        %1226 = vst [vmem:[%s382 + $0x20] sm:$0xff] %v1218
        %1227 = vst [vmem:[%s382 + $0x28] sm:$0xff] %v1219
        %1228 = vst [vmem:[%s382 + $0x30] sm:$0xff] %v1220
        %1229 = vst [vmem:[%s382 + $0x38] sm:$0xff] %v1221
        %s1230 = sand.u32 %s213, 1
        %s1231 = scalar_lea.sflag [#allocation4], %s1230
        %s1232 = sand.u32 %s213, 1
        %s1233 = smul.addr %s1232, 64
        %s1234 = scalar_lea.vmem [#allocation10], %s1233
        // Predicated region
        $region69: #{tpu_custom_call.1} parent=51 // pred_check
          %p1235 = pneg %p223
        $region70: #{tpu_custom_call.1} parent=51 // pred_check_branch
          %1237 = sbr.rel (%p1235) target = $region72
        $region71: #{tpu_custom_call.1} parent=51 // pred_region
          %s1239 = ssub.s32 1024, 1024
          %1240 = vsyncadd %s1231, %s1239
          %s1241 = smul.addr %s27, 8
          %s1242 = smul.addr %s1241, 128
          %s1243 = scalar_lea.hbm %s8, %s1242
          %s1244 = sshll.u32 %s1234, 4
          %s1245 = int_to_ptr.vmem [resolvable:$true] %s1244
          %1250 = dma.vmem_to_hbm [thread:$0]  %s1245, 1024, %s1243, %s1231, 256, 256, 16
        $region72: #{tpu_custom_call.1} parent=51 // pred_fallthru
          _
      $region52: #{tpu_custom_call.1} parent=5 // pred_fallthru
        _
      %p1251 = scmp.le.s32.totalorder 2, %s22
      // Predicated region
      $region73: #{tpu_custom_call.1} parent=5 // pred_check
        %p1252 = pneg %p1251
      $region74: #{tpu_custom_call.1} parent=5 // pred_check_branch
        %1254 = sbr.rel (%p1252) target = $region76
      $region75: #{tpu_custom_call.1} parent=5 // pred_region
        %s1255 = ssub.s32 %s22, 2
        // Predicated region
        $region77: #{tpu_custom_call.1} parent=75 // pred_check
          %p1256 = pneg %p229
        $region78: #{tpu_custom_call.1} parent=75 // pred_check_branch
          %1258 = sbr.rel (%p1256) target = $region80
        $region79: #{tpu_custom_call.1} parent=75 // pred_region
          %s1259 = sand.u32 %s214, 1
          %s1260 = scalar_lea.sflag [#allocation4], %s1259
          %s1261 = sand.u32 %s214, 1
          %s1262 = smul.addr %s1261, 64
          %s1263 = scalar_lea.vmem [#allocation10], %s1262
          %1264 = dma.done %s1260, 1024
        $region80: #{tpu_custom_call.1} parent=75 // pred_fallthru
          _
      $region76: #{tpu_custom_call.1} parent=5 // pred_fallthru
        _
    $region6: #{tpu_custom_call.1} parent=1 // loop_footer
      %s26 = sadd.s32 1, %s22
    $region7: #{tpu_custom_call.1} parent=1 // loop_footer_branch
      %21 = sbr.rel target = $region3
    $region8: #{tpu_custom_call.1} parent=1 // loop_exit
      _
    %1265 = vsyncpa [#allocation3], 1
    %s1266 = scalar_lea.sflag [#allocation3], 1
    %1267 = vsyncpa %s1266, 1
    %1268 = vsyncpa [#allocation6], 1
    %1269 = vsyncpa [#allocation9], 1
    %1270 = vsyncpa [#allocation4], 1
    %s1271 = scalar_lea.sflag [#allocation4], 1
    %1272 = vsyncpa %s1271, 1

</llo_original>
